<compile_context>
chip_gen: v6e
topology: v6e:2x2x1
jax: 0.10.0
libtpu: 0.0.40
codegen_flags: <defaults>
</compile_context>

<pallas_src>
import functools

import jax
import jax.numpy as jnp
from jax import lax
from jax.experimental import pallas as pl
from jax.experimental.pallas import tpu as pltpu

KH = KW = 5
PAD = 2  # (kernel_size - 1) // 2 for stride == 1


def res_block_kernel(x_ref, *refs, C):
    """Fused ResBlock for one batch element, lane-dense (H, W*C) layout.

    x_ref      : (1, H, W*C)            input activation
    refs[:-2]  : per-module param refs, groups of 3:
                   tapw (KH*KW, W*C)    depthwise tap weights, dx-boundary masked
                   pwsh (2C-1,  W*C)    pointwise weights as lane-shift rows
                   bias (1,     W*C)    folded depthwise+pointwise bias
    refs[-2]   : (1, H, W*C)            output
    refs[-1]   : (H+2*PAD, W*C) f32     VMEM scratch (zero-padded rows for dy)
    """
    o_ref = refs[-2]
    pad_ref = refs[-1]
    param_refs = refs[:-2]
    num_modules = len(param_refs) // 3

    H = o_ref.shape[1]
    WC = o_ref.shape[2]

    # Zero once: only the 2 top / 2 bottom pad rows must stay zero; the middle
    # rows are overwritten every module.
    pad_ref[...] = jnp.zeros_like(pad_ref)

    def one_module(cur, tapw_ref, pwsh_ref, b_ref):
        # Stage the current activation into the zero-padded scratch (for dy).
        pad_ref[PAD:PAD + H, :] = cur

        tapw = tapw_ref[...]   # (25, WC)
        pwsh = pwsh_ref[...]   # (2C-1, WC)

        # ---- depthwise 5x5, stride 1, padding 2 --------------------------
        # dy: 5 row-bands of the padded scratch; dx: lane rotations by dx*C
        # with the horizontal zero-pad boundary baked into tapw (wrapped
        # lanes have weight 0).  One accumulator per dy => ILP across bands.
        acc = None
        for dy in range(KH):
            band = pad_ref[dy:dy + H, :]                    # (H, WC)
            part = band * tapw[dy * KW + PAD]               # dx == PAD: no shift
            for dx in (0, 1, 3, 4):
                shift = ((PAD - dx) * C) % WC
                part = part + pltpu.roll(band, shift=shift, axis=1) * tapw[dy * KW + dx]
            acc = part if acc is None else acc + part

        # ---- pointwise 1x1 as lane-shifted VPU FMAs ----------------------
        # out[h, w*C+co] = sum_ci acc[h, w*C+ci] * pw[ci, co]
        #               = sum_s  roll(acc, s)[h, w*C+co] * pwsh[s+C-1][w*C+co]
        y = acc * pwsh[C - 1]                               # s == 0
        for s in range(-(C - 1), C):
            if s == 0:
                continue
            y = y + pltpu.roll(acc, shift=s % WC, axis=1) * pwsh[s + C - 1]
        y = y + b_ref[0]                                    # folded dw+pw bias

        # residual add + ReLU
        return jnp.maximum(y + cur, 0.0)

    cur = x_ref[0]
    for m in range(num_modules):
        tapw_ref, pwsh_ref, b_ref = param_refs[3 * m:3 * m + 3]
        cur = one_module(cur, tapw_ref, pwsh_ref, b_ref)
    o_ref[0] = cur.astype(o_ref.dtype)


def _prep_module_params(dw_w, dw_b, pw_w, pw_b, W, C):
    """Precompute lane-dense, boundary-masked weights for one ResModule."""
    WC = W * C
    w_idx = jnp.arange(W)

    # Depthwise tap weights: tapw[dy*KW+dx, w*C+c] = dw_w[dy,dx,c] if the
    # horizontally shifted column (w + dx - PAD) is in-bounds, else 0.
    tap_rows = []
    for dy in range(KH):
        for dx in range(KW):
            valid = (w_idx + dx - PAD >= 0) & (w_idx + dx - PAD < W)     # (W,)
            row = jnp.where(valid[:, None], dw_w[dy, dx][None, :], 0.0)  # (W, C)
            tap_rows.append(row.reshape(WC))
    tapw = jnp.stack(tap_rows, axis=0).astype(jnp.float32)               # (25, WC)

    # Pointwise weights as 2C-1 lane-shift rows:
    # pwsh[s+C-1, w*C+co] = pw_w[co-s, co] if 0 <= co-s < C else 0.
    co = jnp.arange(C)
    sh_rows = []
    for s in range(-(C - 1), C):
        ci = co - s
        valid = (ci >= 0) & (ci < C)
        w_s = jnp.where(valid, pw_w[jnp.clip(ci, 0, C - 1), co], 0.0)    # (C,)
        sh_rows.append(jnp.tile(w_s, W))                                  # (WC,)
    pwsh = jnp.stack(sh_rows, axis=0).astype(jnp.float32)                # (2C-1, WC)

    # Fold the depthwise bias through the (linear) 1x1 conv: exact.
    b_total = dw_b @ pw_w + pw_b                                          # (C,)
    b_lane = jnp.tile(b_total, W).reshape(1, WC).astype(jnp.float32)      # (1, WC)
    return tapw, pwsh, b_lane


def res_block(x, params):
    """Fused ResBlock. x: (N, H, W, C) NHWC float32. Returns (N, H, W, C)."""
    N, H, W, C = x.shape
    WC = W * C
    x2 = x.reshape(N, H, WC)                      # lane-dense view (free reshape)

    in_specs = [pl.BlockSpec((1, H, WC), lambda n: (n, 0, 0))]
    flat_params = []
    for (dw_w, dw_b, pw_w, pw_b) in params:
        tapw, pwsh, b_lane = _prep_module_params(dw_w, dw_b, pw_w, pw_b, W, C)
        flat_params += [tapw, pwsh, b_lane]
        in_specs += [
            pl.BlockSpec((KH * KW, WC), lambda n: (0, 0)),
            pl.BlockSpec((2 * C - 1, WC), lambda n: (0, 0)),
            pl.BlockSpec((1, WC), lambda n: (0, 0)),
        ]

    out2 = pl.pallas_call(
        functools.partial(res_block_kernel, C=C),
        out_shape=jax.ShapeDtypeStruct((N, H, WC), x.dtype),
        grid_spec=pltpu.PrefetchScalarGridSpec(
            num_scalar_prefetch=0,
            grid=(N,),   # size-2 "parallel" axis -> both TCs on v7x; ~free elsewhere
            in_specs=in_specs,
            out_specs=pl.BlockSpec((1, H, WC), lambda n: (n, 0, 0)),
            scratch_shapes=[pltpu.VMEM((H + 2 * PAD, WC), jnp.float32)],
        ),
        compiler_params=pltpu.CompilerParams(
            dimension_semantics=("parallel",)),
    )(x2, *flat_params)
    return out2.reshape(N, H, W, C)


# ---------------- pure-JAX reference (high precision, for correctness) -------
def res_module_ref(x, dw_w, dw_b, pw_w, pw_b):
    N, H, W, C = x.shape
    dw = dw_w.reshape(KH, KW, 1, C)               # HWIO, depthwise (groups=C)
    h = lax.conv_general_dilated(
        x, dw, window_strides=(1, 1), padding=((PAD, PAD), (PAD, PAD)),
        dimension_numbers=("NHWC", "HWIO", "NHWC"), feature_group_count=C,
        precision=lax.Precision.HIGHEST)
    h = h + dw_b.reshape(1, 1, 1, C)
    h = jnp.einsum("nhwc,cd->nhwd", h, pw_w,
                   precision=lax.Precision.HIGHEST) + pw_b.reshape(1, 1, 1, C)
    return jnp.maximum(h + x, 0.0)


def res_block_ref(x, params):
    for (dw_w, dw_b, pw_w, pw_b) in params:
        x = res_module_ref(x, dw_w, dw_b, pw_w, pw_b)
    return x


if __name__ == "__main__":
    # PyTorch ResBlock(in_channels=8, number=2) on NCHW (2, 8, 16, 16);
    # here NHWC (2, 16, 16, 8) so W*C = 128 is exactly lane-dense.
    N, C, H, W = 2, 8, 16, 16
    number = 2

    key = jax.random.PRNGKey(0)
    key, kx = jax.random.split(key)
    x = jax.random.normal(kx, (N, H, W, C), jnp.float32)

    params = []
    for _ in range(number):
        key, k1, k2, k3, k4 = jax.random.split(key, 5)
        dw_w = 0.1 * jax.random.normal(k1, (KH, KW, C), jnp.float32)
        dw_b = 0.1 * jax.random.normal(k2, (C,), jnp.float32)
        pw_w = 0.1 * jax.random.normal(k3, (C, C), jnp.float32)  # (C_in, C_out)
        pw_b = 0.1 * jax.random.normal(k4, (C,), jnp.float32)
        params.append((dw_w, dw_b, pw_w, pw_b))

    out = jax.block_until_ready(res_block(x, params))
    ref = jax.block_until_ready(res_block_ref(x, params))

    assert out.shape == (N, H, W, C)
    # Kernel is exact f32 (VPU/XLU only), reference is HIGHEST precision ->
    # tight tolerance so layout regressions aren't masked.
    assert jnp.allclose(out, ref, rtol=1e-4, atol=1e-5), "mismatch vs reference"
    print("KERNEL_OK")
</pallas_src>

<mosaic_0001>
module attributes {stable_mosaic.version = 11 : i64} {
  func.func @res_block_kernel(%arg0: i32, %arg1: memref<1x16x128xf32, #tpu.memory_space<vmem>>, %arg2: memref<25x128xf32, #tpu.memory_space<vmem>>, %arg3: memref<15x128xf32, #tpu.memory_space<vmem>>, %arg4: memref<1x128xf32, #tpu.memory_space<vmem>>, %arg5: memref<25x128xf32, #tpu.memory_space<vmem>>, %arg6: memref<15x128xf32, #tpu.memory_space<vmem>>, %arg7: memref<1x128xf32, #tpu.memory_space<vmem>>, %arg8: memref<1x16x128xf32, #tpu.memory_space<vmem>>, %arg9: memref<20x128xf32, #tpu.memory_space<vmem>>) attributes {dimension_semantics = [#tpu.dimension_semantics<parallel>], iteration_bounds = array<i64: 2>, scalar_prefetch = 0 : i64, scratch_operands = 1 : i64, tpu.core_type = #tpu.core_type<tc>, window_params = [{transform_indices = @transform_0, window_bounds = array<i64: 1, 16, 128>}, {pipeline_mode = #tpu.pipeline_mode<synchronous>, transform_indices = @transform_1, window_bounds = array<i64: 25, 128>}, {pipeline_mode = #tpu.pipeline_mode<synchronous>, transform_indices = @transform_2, window_bounds = array<i64: 15, 128>}, {pipeline_mode = #tpu.pipeline_mode<synchronous>, transform_indices = @transform_3, window_bounds = array<i64: 1, 128>}, {pipeline_mode = #tpu.pipeline_mode<synchronous>, transform_indices = @transform_4, window_bounds = array<i64: 25, 128>}, {pipeline_mode = #tpu.pipeline_mode<synchronous>, transform_indices = @transform_5, window_bounds = array<i64: 15, 128>}, {pipeline_mode = #tpu.pipeline_mode<synchronous>, transform_indices = @transform_6, window_bounds = array<i64: 1, 128>}, {transform_indices = @transform_7, window_bounds = array<i64: 1, 16, 128>}]} {
    %cst = arith.constant 0.000000e+00 : f32
    %0 = vector.broadcast %cst : f32 to vector<20x128xf32>
    %c0 = arith.constant 0 : index
    %c0_0 = arith.constant 0 : index
    %1 = vector.load %arg9[%c0, %c0_0] : memref<20x128xf32, #tpu.memory_space<vmem>>, vector<20x128xf32>
    tpu.vector_store %arg9[%c0, %c0_0], %0 {strides = array<i32>} : memref<20x128xf32, #tpu.memory_space<vmem>>, vector<20x128xf32>,
    %c0_1 = arith.constant 0 : index
    %c0_2 = arith.constant 0 : index
    %c0_3 = arith.constant 0 : index
    %2 = vector.load %arg1[%c0_1, %c0_2, %c0_3] : memref<1x16x128xf32, #tpu.memory_space<vmem>>, vector<1x16x128xf32>
    %3 = vector.shape_cast %2 : vector<1x16x128xf32> to vector<16x128xf32>
    %c2 = arith.constant 2 : index
    %c0_4 = arith.constant 0 : index
    %4 = vector.load %arg9[%c2, %c0_4] : memref<20x128xf32, #tpu.memory_space<vmem>>, vector<16x128xf32>
    tpu.vector_store %arg9[%c2, %c0_4], %3 {strides = array<i32>} : memref<20x128xf32, #tpu.memory_space<vmem>>, vector<16x128xf32>,
    %c0_5 = arith.constant 0 : index
    %c0_6 = arith.constant 0 : index
    %5 = vector.load %arg2[%c0_5, %c0_6] : memref<25x128xf32, #tpu.memory_space<vmem>>, vector<25x128xf32>
    %c0_7 = arith.constant 0 : index
    %c0_8 = arith.constant 0 : index
    %6 = vector.load %arg3[%c0_7, %c0_8] : memref<15x128xf32, #tpu.memory_space<vmem>>, vector<15x128xf32>
    %c0_9 = arith.constant 0 : index
    %c0_10 = arith.constant 0 : index
    %7 = vector.load %arg9[%c0_9, %c0_10] : memref<20x128xf32, #tpu.memory_space<vmem>>, vector<16x128xf32>
    %8 = vector.extract_strided_slice %5 {offsets = [2, 0], sizes = [1, 128], strides = [1, 1]} : vector<25x128xf32> to vector<1x128xf32>
    %9 = vector.shape_cast %8 : vector<1x128xf32> to vector<128xf32>
    %10 = vector.shape_cast %9 : vector<128xf32> to vector<1x128xf32>
    %11 = vector.broadcast %10 : vector<1x128xf32> to vector<16x128xf32>
    %12 = arith.mulf %7, %11 : vector<16x128xf32>
    %c16_i32 = arith.constant 16 : i32
    %13 = tpu.dynamic_rotate %7 by %c16_i32 dim 1 : vector<16x128xf32>, i32 -> vector<16x128xf32>
    %14 = vector.extract_strided_slice %5 {offsets = [0, 0], sizes = [1, 128], strides = [1, 1]} : vector<25x128xf32> to vector<1x128xf32>
    %15 = vector.shape_cast %14 : vector<1x128xf32> to vector<128xf32>
    %16 = vector.shape_cast %15 : vector<128xf32> to vector<1x128xf32>
    %17 = vector.broadcast %16 : vector<1x128xf32> to vector<16x128xf32>
    %18 = arith.mulf %13, %17 : vector<16x128xf32>
    %19 = arith.addf %12, %18 : vector<16x128xf32>
    %c8_i32 = arith.constant 8 : i32
    %20 = tpu.dynamic_rotate %7 by %c8_i32 dim 1 : vector<16x128xf32>, i32 -> vector<16x128xf32>
    %21 = vector.extract_strided_slice %5 {offsets = [1, 0], sizes = [1, 128], strides = [1, 1]} : vector<25x128xf32> to vector<1x128xf32>
    %22 = vector.shape_cast %21 : vector<1x128xf32> to vector<128xf32>
    %23 = vector.shape_cast %22 : vector<128xf32> to vector<1x128xf32>
    %24 = vector.broadcast %23 : vector<1x128xf32> to vector<16x128xf32>
    %25 = arith.mulf %20, %24 : vector<16x128xf32>
    %26 = arith.addf %19, %25 : vector<16x128xf32>
    %c120_i32 = arith.constant 120 : i32
    %27 = tpu.dynamic_rotate %7 by %c120_i32 dim 1 : vector<16x128xf32>, i32 -> vector<16x128xf32>
    %28 = vector.extract_strided_slice %5 {offsets = [3, 0], sizes = [1, 128], strides = [1, 1]} : vector<25x128xf32> to vector<1x128xf32>
    %29 = vector.shape_cast %28 : vector<1x128xf32> to vector<128xf32>
    %30 = vector.shape_cast %29 : vector<128xf32> to vector<1x128xf32>
    %31 = vector.broadcast %30 : vector<1x128xf32> to vector<16x128xf32>
    %32 = arith.mulf %27, %31 : vector<16x128xf32>
    %33 = arith.addf %26, %32 : vector<16x128xf32>
    %c112_i32 = arith.constant 112 : i32
    %34 = tpu.dynamic_rotate %7 by %c112_i32 dim 1 : vector<16x128xf32>, i32 -> vector<16x128xf32>
    %35 = vector.extract_strided_slice %5 {offsets = [4, 0], sizes = [1, 128], strides = [1, 1]} : vector<25x128xf32> to vector<1x128xf32>
    %36 = vector.shape_cast %35 : vector<1x128xf32> to vector<128xf32>
    %37 = vector.shape_cast %36 : vector<128xf32> to vector<1x128xf32>
    %38 = vector.broadcast %37 : vector<1x128xf32> to vector<16x128xf32>
    %39 = arith.mulf %34, %38 : vector<16x128xf32>
    %40 = arith.addf %33, %39 : vector<16x128xf32>
    %c1 = arith.constant 1 : index
    %c0_11 = arith.constant 0 : index
    %41 = vector.load %arg9[%c1, %c0_11] : memref<20x128xf32, #tpu.memory_space<vmem>>, vector<16x128xf32>
    %42 = vector.extract_strided_slice %5 {offsets = [7, 0], sizes = [1, 128], strides = [1, 1]} : vector<25x128xf32> to vector<1x128xf32>
    %43 = vector.shape_cast %42 : vector<1x128xf32> to vector<128xf32>
    %44 = vector.shape_cast %43 : vector<128xf32> to vector<1x128xf32>
    %45 = vector.broadcast %44 : vector<1x128xf32> to vector<16x128xf32>
    %46 = arith.mulf %41, %45 : vector<16x128xf32>
    %c16_i32_12 = arith.constant 16 : i32
    %47 = tpu.dynamic_rotate %41 by %c16_i32_12 dim 1 : vector<16x128xf32>, i32 -> vector<16x128xf32>
    %48 = vector.extract_strided_slice %5 {offsets = [5, 0], sizes = [1, 128], strides = [1, 1]} : vector<25x128xf32> to vector<1x128xf32>
    %49 = vector.shape_cast %48 : vector<1x128xf32> to vector<128xf32>
    %50 = vector.shape_cast %49 : vector<128xf32> to vector<1x128xf32>
    %51 = vector.broadcast %50 : vector<1x128xf32> to vector<16x128xf32>
    %52 = arith.mulf %47, %51 : vector<16x128xf32>
    %53 = arith.addf %46, %52 : vector<16x128xf32>
    %c8_i32_13 = arith.constant 8 : i32
    %54 = tpu.dynamic_rotate %41 by %c8_i32_13 dim 1 : vector<16x128xf32>, i32 -> vector<16x128xf32>
    %55 = vector.extract_strided_slice %5 {offsets = [6, 0], sizes = [1, 128], strides = [1, 1]} : vector<25x128xf32> to vector<1x128xf32>
    %56 = vector.shape_cast %55 : vector<1x128xf32> to vector<128xf32>
    %57 = vector.shape_cast %56 : vector<128xf32> to vector<1x128xf32>
    %58 = vector.broadcast %57 : vector<1x128xf32> to vector<16x128xf32>
    %59 = arith.mulf %54, %58 : vector<16x128xf32>
    %60 = arith.addf %53, %59 : vector<16x128xf32>
    %c120_i32_14 = arith.constant 120 : i32
    %61 = tpu.dynamic_rotate %41 by %c120_i32_14 dim 1 : vector<16x128xf32>, i32 -> vector<16x128xf32>
    %62 = vector.extract_strided_slice %5 {offsets = [8, 0], sizes = [1, 128], strides = [1, 1]} : vector<25x128xf32> to vector<1x128xf32>
    %63 = vector.shape_cast %62 : vector<1x128xf32> to vector<128xf32>
    %64 = vector.shape_cast %63 : vector<128xf32> to vector<1x128xf32>
    %65 = vector.broadcast %64 : vector<1x128xf32> to vector<16x128xf32>
    %66 = arith.mulf %61, %65 : vector<16x128xf32>
    %67 = arith.addf %60, %66 : vector<16x128xf32>
    %c112_i32_15 = arith.constant 112 : i32
    %68 = tpu.dynamic_rotate %41 by %c112_i32_15 dim 1 : vector<16x128xf32>, i32 -> vector<16x128xf32>
    %69 = vector.extract_strided_slice %5 {offsets = [9, 0], sizes = [1, 128], strides = [1, 1]} : vector<25x128xf32> to vector<1x128xf32>
    %70 = vector.shape_cast %69 : vector<1x128xf32> to vector<128xf32>
    %71 = vector.shape_cast %70 : vector<128xf32> to vector<1x128xf32>
    %72 = vector.broadcast %71 : vector<1x128xf32> to vector<16x128xf32>
    %73 = arith.mulf %68, %72 : vector<16x128xf32>
    %74 = arith.addf %67, %73 : vector<16x128xf32>
    %75 = arith.addf %40, %74 : vector<16x128xf32>
    %c2_16 = arith.constant 2 : index
    %c0_17 = arith.constant 0 : index
    %76 = vector.load %arg9[%c2_16, %c0_17] : memref<20x128xf32, #tpu.memory_space<vmem>>, vector<16x128xf32>
    %77 = vector.extract_strided_slice %5 {offsets = [12, 0], sizes = [1, 128], strides = [1, 1]} : vector<25x128xf32> to vector<1x128xf32>
    %78 = vector.shape_cast %77 : vector<1x128xf32> to vector<128xf32>
    %79 = vector.shape_cast %78 : vector<128xf32> to vector<1x128xf32>
    %80 = vector.broadcast %79 : vector<1x128xf32> to vector<16x128xf32>
    %81 = arith.mulf %76, %80 : vector<16x128xf32>
    %c16_i32_18 = arith.constant 16 : i32
    %82 = tpu.dynamic_rotate %76 by %c16_i32_18 dim 1 : vector<16x128xf32>, i32 -> vector<16x128xf32>
    %83 = vector.extract_strided_slice %5 {offsets = [10, 0], sizes = [1, 128], strides = [1, 1]} : vector<25x128xf32> to vector<1x128xf32>
    %84 = vector.shape_cast %83 : vector<1x128xf32> to vector<128xf32>
    %85 = vector.shape_cast %84 : vector<128xf32> to vector<1x128xf32>
    %86 = vector.broadcast %85 : vector<1x128xf32> to vector<16x128xf32>
    %87 = arith.mulf %82, %86 : vector<16x128xf32>
    %88 = arith.addf %81, %87 : vector<16x128xf32>
    %c8_i32_19 = arith.constant 8 : i32
    %89 = tpu.dynamic_rotate %76 by %c8_i32_19 dim 1 : vector<16x128xf32>, i32 -> vector<16x128xf32>
    %90 = vector.extract_strided_slice %5 {offsets = [11, 0], sizes = [1, 128], strides = [1, 1]} : vector<25x128xf32> to vector<1x128xf32>
    %91 = vector.shape_cast %90 : vector<1x128xf32> to vector<128xf32>
    %92 = vector.shape_cast %91 : vector<128xf32> to vector<1x128xf32>
    %93 = vector.broadcast %92 : vector<1x128xf32> to vector<16x128xf32>
    %94 = arith.mulf %89, %93 : vector<16x128xf32>
    %95 = arith.addf %88, %94 : vector<16x128xf32>
    %c120_i32_20 = arith.constant 120 : i32
    %96 = tpu.dynamic_rotate %76 by %c120_i32_20 dim 1 : vector<16x128xf32>, i32 -> vector<16x128xf32>
    %97 = vector.extract_strided_slice %5 {offsets = [13, 0], sizes = [1, 128], strides = [1, 1]} : vector<25x128xf32> to vector<1x128xf32>
    %98 = vector.shape_cast %97 : vector<1x128xf32> to vector<128xf32>
    %99 = vector.shape_cast %98 : vector<128xf32> to vector<1x128xf32>
    %100 = vector.broadcast %99 : vector<1x128xf32> to vector<16x128xf32>
    %101 = arith.mulf %96, %100 : vector<16x128xf32>
    %102 = arith.addf %95, %101 : vector<16x128xf32>
    %c112_i32_21 = arith.constant 112 : i32
    %103 = tpu.dynamic_rotate %76 by %c112_i32_21 dim 1 : vector<16x128xf32>, i32 -> vector<16x128xf32>
    %104 = vector.extract_strided_slice %5 {offsets = [14, 0], sizes = [1, 128], strides = [1, 1]} : vector<25x128xf32> to vector<1x128xf32>
    %105 = vector.shape_cast %104 : vector<1x128xf32> to vector<128xf32>
    %106 = vector.shape_cast %105 : vector<128xf32> to vector<1x128xf32>
    %107 = vector.broadcast %106 : vector<1x128xf32> to vector<16x128xf32>
    %108 = arith.mulf %103, %107 : vector<16x128xf32>
    %109 = arith.addf %102, %108 : vector<16x128xf32>
    %110 = arith.addf %75, %109 : vector<16x128xf32>
    %c3 = arith.constant 3 : index
    %c0_22 = arith.constant 0 : index
    %111 = vector.load %arg9[%c3, %c0_22] : memref<20x128xf32, #tpu.memory_space<vmem>>, vector<16x128xf32>
    %112 = vector.extract_strided_slice %5 {offsets = [17, 0], sizes = [1, 128], strides = [1, 1]} : vector<25x128xf32> to vector<1x128xf32>
    %113 = vector.shape_cast %112 : vector<1x128xf32> to vector<128xf32>
    %114 = vector.shape_cast %113 : vector<128xf32> to vector<1x128xf32>
    %115 = vector.broadcast %114 : vector<1x128xf32> to vector<16x128xf32>
    %116 = arith.mulf %111, %115 : vector<16x128xf32>
    %c16_i32_23 = arith.constant 16 : i32
    %117 = tpu.dynamic_rotate %111 by %c16_i32_23 dim 1 : vector<16x128xf32>, i32 -> vector<16x128xf32>
    %118 = vector.extract_strided_slice %5 {offsets = [15, 0], sizes = [1, 128], strides = [1, 1]} : vector<25x128xf32> to vector<1x128xf32>
    %119 = vector.shape_cast %118 : vector<1x128xf32> to vector<128xf32>
    %120 = vector.shape_cast %119 : vector<128xf32> to vector<1x128xf32>
    %121 = vector.broadcast %120 : vector<1x128xf32> to vector<16x128xf32>
    %122 = arith.mulf %117, %121 : vector<16x128xf32>
    %123 = arith.addf %116, %122 : vector<16x128xf32>
    %c8_i32_24 = arith.constant 8 : i32
    %124 = tpu.dynamic_rotate %111 by %c8_i32_24 dim 1 : vector<16x128xf32>, i32 -> vector<16x128xf32>
    %125 = vector.extract_strided_slice %5 {offsets = [16, 0], sizes = [1, 128], strides = [1, 1]} : vector<25x128xf32> to vector<1x128xf32>
    %126 = vector.shape_cast %125 : vector<1x128xf32> to vector<128xf32>
    %127 = vector.shape_cast %126 : vector<128xf32> to vector<1x128xf32>
    %128 = vector.broadcast %127 : vector<1x128xf32> to vector<16x128xf32>
    %129 = arith.mulf %124, %128 : vector<16x128xf32>
    %130 = arith.addf %123, %129 : vector<16x128xf32>
    %c120_i32_25 = arith.constant 120 : i32
    %131 = tpu.dynamic_rotate %111 by %c120_i32_25 dim 1 : vector<16x128xf32>, i32 -> vector<16x128xf32>
    %132 = vector.extract_strided_slice %5 {offsets = [18, 0], sizes = [1, 128], strides = [1, 1]} : vector<25x128xf32> to vector<1x128xf32>
    %133 = vector.shape_cast %132 : vector<1x128xf32> to vector<128xf32>
    %134 = vector.shape_cast %133 : vector<128xf32> to vector<1x128xf32>
    %135 = vector.broadcast %134 : vector<1x128xf32> to vector<16x128xf32>
    %136 = arith.mulf %131, %135 : vector<16x128xf32>
    %137 = arith.addf %130, %136 : vector<16x128xf32>
    %c112_i32_26 = arith.constant 112 : i32
    %138 = tpu.dynamic_rotate %111 by %c112_i32_26 dim 1 : vector<16x128xf32>, i32 -> vector<16x128xf32>
    %139 = vector.extract_strided_slice %5 {offsets = [19, 0], sizes = [1, 128], strides = [1, 1]} : vector<25x128xf32> to vector<1x128xf32>
    %140 = vector.shape_cast %139 : vector<1x128xf32> to vector<128xf32>
    %141 = vector.shape_cast %140 : vector<128xf32> to vector<1x128xf32>
    %142 = vector.broadcast %141 : vector<1x128xf32> to vector<16x128xf32>
    %143 = arith.mulf %138, %142 : vector<16x128xf32>
    %144 = arith.addf %137, %143 : vector<16x128xf32>
    %145 = arith.addf %110, %144 : vector<16x128xf32>
    %c4 = arith.constant 4 : index
    %c0_27 = arith.constant 0 : index
    %146 = vector.load %arg9[%c4, %c0_27] : memref<20x128xf32, #tpu.memory_space<vmem>>, vector<16x128xf32>
    %147 = vector.extract_strided_slice %5 {offsets = [22, 0], sizes = [1, 128], strides = [1, 1]} : vector<25x128xf32> to vector<1x128xf32>
    %148 = vector.shape_cast %147 : vector<1x128xf32> to vector<128xf32>
    %149 = vector.shape_cast %148 : vector<128xf32> to vector<1x128xf32>
    %150 = vector.broadcast %149 : vector<1x128xf32> to vector<16x128xf32>
    %151 = arith.mulf %146, %150 : vector<16x128xf32>
    %c16_i32_28 = arith.constant 16 : i32
    %152 = tpu.dynamic_rotate %146 by %c16_i32_28 dim 1 : vector<16x128xf32>, i32 -> vector<16x128xf32>
    %153 = vector.extract_strided_slice %5 {offsets = [20, 0], sizes = [1, 128], strides = [1, 1]} : vector<25x128xf32> to vector<1x128xf32>
    %154 = vector.shape_cast %153 : vector<1x128xf32> to vector<128xf32>
    %155 = vector.shape_cast %154 : vector<128xf32> to vector<1x128xf32>
    %156 = vector.broadcast %155 : vector<1x128xf32> to vector<16x128xf32>
    %157 = arith.mulf %152, %156 : vector<16x128xf32>
    %158 = arith.addf %151, %157 : vector<16x128xf32>
    %c8_i32_29 = arith.constant 8 : i32
    %159 = tpu.dynamic_rotate %146 by %c8_i32_29 dim 1 : vector<16x128xf32>, i32 -> vector<16x128xf32>
    %160 = vector.extract_strided_slice %5 {offsets = [21, 0], sizes = [1, 128], strides = [1, 1]} : vector<25x128xf32> to vector<1x128xf32>
    %161 = vector.shape_cast %160 : vector<1x128xf32> to vector<128xf32>
    %162 = vector.shape_cast %161 : vector<128xf32> to vector<1x128xf32>
    %163 = vector.broadcast %162 : vector<1x128xf32> to vector<16x128xf32>
    %164 = arith.mulf %159, %163 : vector<16x128xf32>
    %165 = arith.addf %158, %164 : vector<16x128xf32>
    %c120_i32_30 = arith.constant 120 : i32
    %166 = tpu.dynamic_rotate %146 by %c120_i32_30 dim 1 : vector<16x128xf32>, i32 -> vector<16x128xf32>
    %167 = vector.extract_strided_slice %5 {offsets = [23, 0], sizes = [1, 128], strides = [1, 1]} : vector<25x128xf32> to vector<1x128xf32>
    %168 = vector.shape_cast %167 : vector<1x128xf32> to vector<128xf32>
    %169 = vector.shape_cast %168 : vector<128xf32> to vector<1x128xf32>
    %170 = vector.broadcast %169 : vector<1x128xf32> to vector<16x128xf32>
    %171 = arith.mulf %166, %170 : vector<16x128xf32>
    %172 = arith.addf %165, %171 : vector<16x128xf32>
    %c112_i32_31 = arith.constant 112 : i32
    %173 = tpu.dynamic_rotate %146 by %c112_i32_31 dim 1 : vector<16x128xf32>, i32 -> vector<16x128xf32>
    %174 = vector.extract_strided_slice %5 {offsets = [24, 0], sizes = [1, 128], strides = [1, 1]} : vector<25x128xf32> to vector<1x128xf32>
    %175 = vector.shape_cast %174 : vector<1x128xf32> to vector<128xf32>
    %176 = vector.shape_cast %175 : vector<128xf32> to vector<1x128xf32>
    %177 = vector.broadcast %176 : vector<1x128xf32> to vector<16x128xf32>
    %178 = arith.mulf %173, %177 : vector<16x128xf32>
    %179 = arith.addf %172, %178 : vector<16x128xf32>
    %180 = arith.addf %145, %179 : vector<16x128xf32>
    %181 = vector.extract_strided_slice %6 {offsets = [7, 0], sizes = [1, 128], strides = [1, 1]} : vector<15x128xf32> to vector<1x128xf32>
    %182 = vector.shape_cast %181 : vector<1x128xf32> to vector<128xf32>
    %183 = vector.shape_cast %182 : vector<128xf32> to vector<1x128xf32>
    %184 = vector.broadcast %183 : vector<1x128xf32> to vector<16x128xf32>
    %185 = arith.mulf %180, %184 : vector<16x128xf32>
    %c121_i32 = arith.constant 121 : i32
    %186 = tpu.dynamic_rotate %180 by %c121_i32 dim 1 : vector<16x128xf32>, i32 -> vector<16x128xf32>
    %187 = vector.extract_strided_slice %6 {offsets = [0, 0], sizes = [1, 128], strides = [1, 1]} : vector<15x128xf32> to vector<1x128xf32>
    %188 = vector.shape_cast %187 : vector<1x128xf32> to vector<128xf32>
    %189 = vector.shape_cast %188 : vector<128xf32> to vector<1x128xf32>
    %190 = vector.broadcast %189 : vector<1x128xf32> to vector<16x128xf32>
    %191 = arith.mulf %186, %190 : vector<16x128xf32>
    %192 = arith.addf %185, %191 : vector<16x128xf32>
    %c122_i32 = arith.constant 122 : i32
    %193 = tpu.dynamic_rotate %180 by %c122_i32 dim 1 : vector<16x128xf32>, i32 -> vector<16x128xf32>
    %194 = vector.extract_strided_slice %6 {offsets = [1, 0], sizes = [1, 128], strides = [1, 1]} : vector<15x128xf32> to vector<1x128xf32>
    %195 = vector.shape_cast %194 : vector<1x128xf32> to vector<128xf32>
    %196 = vector.shape_cast %195 : vector<128xf32> to vector<1x128xf32>
    %197 = vector.broadcast %196 : vector<1x128xf32> to vector<16x128xf32>
    %198 = arith.mulf %193, %197 : vector<16x128xf32>
    %199 = arith.addf %192, %198 : vector<16x128xf32>
    %c123_i32 = arith.constant 123 : i32
    %200 = tpu.dynamic_rotate %180 by %c123_i32 dim 1 : vector<16x128xf32>, i32 -> vector<16x128xf32>
    %201 = vector.extract_strided_slice %6 {offsets = [2, 0], sizes = [1, 128], strides = [1, 1]} : vector<15x128xf32> to vector<1x128xf32>
    %202 = vector.shape_cast %201 : vector<1x128xf32> to vector<128xf32>
    %203 = vector.shape_cast %202 : vector<128xf32> to vector<1x128xf32>
    %204 = vector.broadcast %203 : vector<1x128xf32> to vector<16x128xf32>
    %205 = arith.mulf %200, %204 : vector<16x128xf32>
    %206 = arith.addf %199, %205 : vector<16x128xf32>
    %c124_i32 = arith.constant 124 : i32
    %207 = tpu.dynamic_rotate %180 by %c124_i32 dim 1 : vector<16x128xf32>, i32 -> vector<16x128xf32>
    %208 = vector.extract_strided_slice %6 {offsets = [3, 0], sizes = [1, 128], strides = [1, 1]} : vector<15x128xf32> to vector<1x128xf32>
    %209 = vector.shape_cast %208 : vector<1x128xf32> to vector<128xf32>
    %210 = vector.shape_cast %209 : vector<128xf32> to vector<1x128xf32>
    %211 = vector.broadcast %210 : vector<1x128xf32> to vector<16x128xf32>
    %212 = arith.mulf %207, %211 : vector<16x128xf32>
    %213 = arith.addf %206, %212 : vector<16x128xf32>
    %c125_i32 = arith.constant 125 : i32
    %214 = tpu.dynamic_rotate %180 by %c125_i32 dim 1 : vector<16x128xf32>, i32 -> vector<16x128xf32>
    %215 = vector.extract_strided_slice %6 {offsets = [4, 0], sizes = [1, 128], strides = [1, 1]} : vector<15x128xf32> to vector<1x128xf32>
    %216 = vector.shape_cast %215 : vector<1x128xf32> to vector<128xf32>
    %217 = vector.shape_cast %216 : vector<128xf32> to vector<1x128xf32>
    %218 = vector.broadcast %217 : vector<1x128xf32> to vector<16x128xf32>
    %219 = arith.mulf %214, %218 : vector<16x128xf32>
    %220 = arith.addf %213, %219 : vector<16x128xf32>
    %c126_i32 = arith.constant 126 : i32
    %221 = tpu.dynamic_rotate %180 by %c126_i32 dim 1 : vector<16x128xf32>, i32 -> vector<16x128xf32>
    %222 = vector.extract_strided_slice %6 {offsets = [5, 0], sizes = [1, 128], strides = [1, 1]} : vector<15x128xf32> to vector<1x128xf32>
    %223 = vector.shape_cast %222 : vector<1x128xf32> to vector<128xf32>
    %224 = vector.shape_cast %223 : vector<128xf32> to vector<1x128xf32>
    %225 = vector.broadcast %224 : vector<1x128xf32> to vector<16x128xf32>
    %226 = arith.mulf %221, %225 : vector<16x128xf32>
    %227 = arith.addf %220, %226 : vector<16x128xf32>
    %c127_i32 = arith.constant 127 : i32
    %228 = tpu.dynamic_rotate %180 by %c127_i32 dim 1 : vector<16x128xf32>, i32 -> vector<16x128xf32>
    %229 = vector.extract_strided_slice %6 {offsets = [6, 0], sizes = [1, 128], strides = [1, 1]} : vector<15x128xf32> to vector<1x128xf32>
    %230 = vector.shape_cast %229 : vector<1x128xf32> to vector<128xf32>
    %231 = vector.shape_cast %230 : vector<128xf32> to vector<1x128xf32>
    %232 = vector.broadcast %231 : vector<1x128xf32> to vector<16x128xf32>
    %233 = arith.mulf %228, %232 : vector<16x128xf32>
    %234 = arith.addf %227, %233 : vector<16x128xf32>
    %c1_i32 = arith.constant 1 : i32
    %235 = tpu.dynamic_rotate %180 by %c1_i32 dim 1 : vector<16x128xf32>, i32 -> vector<16x128xf32>
    %236 = vector.extract_strided_slice %6 {offsets = [8, 0], sizes = [1, 128], strides = [1, 1]} : vector<15x128xf32> to vector<1x128xf32>
    %237 = vector.shape_cast %236 : vector<1x128xf32> to vector<128xf32>
    %238 = vector.shape_cast %237 : vector<128xf32> to vector<1x128xf32>
    %239 = vector.broadcast %238 : vector<1x128xf32> to vector<16x128xf32>
    %240 = arith.mulf %235, %239 : vector<16x128xf32>
    %241 = arith.addf %234, %240 : vector<16x128xf32>
    %c2_i32 = arith.constant 2 : i32
    %242 = tpu.dynamic_rotate %180 by %c2_i32 dim 1 : vector<16x128xf32>, i32 -> vector<16x128xf32>
    %243 = vector.extract_strided_slice %6 {offsets = [9, 0], sizes = [1, 128], strides = [1, 1]} : vector<15x128xf32> to vector<1x128xf32>
    %244 = vector.shape_cast %243 : vector<1x128xf32> to vector<128xf32>
    %245 = vector.shape_cast %244 : vector<128xf32> to vector<1x128xf32>
    %246 = vector.broadcast %245 : vector<1x128xf32> to vector<16x128xf32>
    %247 = arith.mulf %242, %246 : vector<16x128xf32>
    %248 = arith.addf %241, %247 : vector<16x128xf32>
    %c3_i32 = arith.constant 3 : i32
    %249 = tpu.dynamic_rotate %180 by %c3_i32 dim 1 : vector<16x128xf32>, i32 -> vector<16x128xf32>
    %250 = vector.extract_strided_slice %6 {offsets = [10, 0], sizes = [1, 128], strides = [1, 1]} : vector<15x128xf32> to vector<1x128xf32>
    %251 = vector.shape_cast %250 : vector<1x128xf32> to vector<128xf32>
    %252 = vector.shape_cast %251 : vector<128xf32> to vector<1x128xf32>
    %253 = vector.broadcast %252 : vector<1x128xf32> to vector<16x128xf32>
    %254 = arith.mulf %249, %253 : vector<16x128xf32>
    %255 = arith.addf %248, %254 : vector<16x128xf32>
    %c4_i32 = arith.constant 4 : i32
    %256 = tpu.dynamic_rotate %180 by %c4_i32 dim 1 : vector<16x128xf32>, i32 -> vector<16x128xf32>
    %257 = vector.extract_strided_slice %6 {offsets = [11, 0], sizes = [1, 128], strides = [1, 1]} : vector<15x128xf32> to vector<1x128xf32>
    %258 = vector.shape_cast %257 : vector<1x128xf32> to vector<128xf32>
    %259 = vector.shape_cast %258 : vector<128xf32> to vector<1x128xf32>
    %260 = vector.broadcast %259 : vector<1x128xf32> to vector<16x128xf32>
    %261 = arith.mulf %256, %260 : vector<16x128xf32>
    %262 = arith.addf %255, %261 : vector<16x128xf32>
    %c5_i32 = arith.constant 5 : i32
    %263 = tpu.dynamic_rotate %180 by %c5_i32 dim 1 : vector<16x128xf32>, i32 -> vector<16x128xf32>
    %264 = vector.extract_strided_slice %6 {offsets = [12, 0], sizes = [1, 128], strides = [1, 1]} : vector<15x128xf32> to vector<1x128xf32>
    %265 = vector.shape_cast %264 : vector<1x128xf32> to vector<128xf32>
    %266 = vector.shape_cast %265 : vector<128xf32> to vector<1x128xf32>
    %267 = vector.broadcast %266 : vector<1x128xf32> to vector<16x128xf32>
    %268 = arith.mulf %263, %267 : vector<16x128xf32>
    %269 = arith.addf %262, %268 : vector<16x128xf32>
    %c6_i32 = arith.constant 6 : i32
    %270 = tpu.dynamic_rotate %180 by %c6_i32 dim 1 : vector<16x128xf32>, i32 -> vector<16x128xf32>
    %271 = vector.extract_strided_slice %6 {offsets = [13, 0], sizes = [1, 128], strides = [1, 1]} : vector<15x128xf32> to vector<1x128xf32>
    %272 = vector.shape_cast %271 : vector<1x128xf32> to vector<128xf32>
    %273 = vector.shape_cast %272 : vector<128xf32> to vector<1x128xf32>
    %274 = vector.broadcast %273 : vector<1x128xf32> to vector<16x128xf32>
    %275 = arith.mulf %270, %274 : vector<16x128xf32>
    %276 = arith.addf %269, %275 : vector<16x128xf32>
    %c7_i32 = arith.constant 7 : i32
    %277 = tpu.dynamic_rotate %180 by %c7_i32 dim 1 : vector<16x128xf32>, i32 -> vector<16x128xf32>
    %278 = vector.extract_strided_slice %6 {offsets = [14, 0], sizes = [1, 128], strides = [1, 1]} : vector<15x128xf32> to vector<1x128xf32>
    %279 = vector.shape_cast %278 : vector<1x128xf32> to vector<128xf32>
    %280 = vector.shape_cast %279 : vector<128xf32> to vector<1x128xf32>
    %281 = vector.broadcast %280 : vector<1x128xf32> to vector<16x128xf32>
    %282 = arith.mulf %277, %281 : vector<16x128xf32>
    %283 = arith.addf %276, %282 : vector<16x128xf32>
    %c0_32 = arith.constant 0 : index
    %c0_33 = arith.constant 0 : index
    %284 = vector.load %arg4[%c0_32, %c0_33] : memref<1x128xf32, #tpu.memory_space<vmem>>, vector<1x128xf32>
    %285 = vector.shape_cast %284 : vector<1x128xf32> to vector<128xf32>
    %286 = vector.shape_cast %285 : vector<128xf32> to vector<1x128xf32>
    %287 = vector.broadcast %286 : vector<1x128xf32> to vector<16x128xf32>
    %288 = arith.addf %283, %287 : vector<16x128xf32>
    %289 = arith.addf %288, %3 : vector<16x128xf32>
    %cst_34 = arith.constant 0.000000e+00 : f32
    %290 = vector.broadcast %cst_34 : f32 to vector<16x128xf32>
    %291 = arith.maximumf %289, %290 : vector<16x128xf32>
    %c2_35 = arith.constant 2 : index
    %c0_36 = arith.constant 0 : index
    %292 = vector.load %arg9[%c2_35, %c0_36] : memref<20x128xf32, #tpu.memory_space<vmem>>, vector<16x128xf32>
    tpu.vector_store %arg9[%c2_35, %c0_36], %291 {strides = array<i32>} : memref<20x128xf32, #tpu.memory_space<vmem>>, vector<16x128xf32>,
    %c0_37 = arith.constant 0 : index
    %c0_38 = arith.constant 0 : index
    %293 = vector.load %arg5[%c0_37, %c0_38] : memref<25x128xf32, #tpu.memory_space<vmem>>, vector<25x128xf32>
    %c0_39 = arith.constant 0 : index
    %c0_40 = arith.constant 0 : index
    %294 = vector.load %arg6[%c0_39, %c0_40] : memref<15x128xf32, #tpu.memory_space<vmem>>, vector<15x128xf32>
    %c0_41 = arith.constant 0 : index
    %c0_42 = arith.constant 0 : index
    %295 = vector.load %arg9[%c0_41, %c0_42] : memref<20x128xf32, #tpu.memory_space<vmem>>, vector<16x128xf32>
    %296 = vector.extract_strided_slice %293 {offsets = [2, 0], sizes = [1, 128], strides = [1, 1]} : vector<25x128xf32> to vector<1x128xf32>
    %297 = vector.shape_cast %296 : vector<1x128xf32> to vector<128xf32>
    %298 = vector.shape_cast %297 : vector<128xf32> to vector<1x128xf32>
    %299 = vector.broadcast %298 : vector<1x128xf32> to vector<16x128xf32>
    %300 = arith.mulf %295, %299 : vector<16x128xf32>
    %c16_i32_43 = arith.constant 16 : i32
    %301 = tpu.dynamic_rotate %295 by %c16_i32_43 dim 1 : vector<16x128xf32>, i32 -> vector<16x128xf32>
    %302 = vector.extract_strided_slice %293 {offsets = [0, 0], sizes = [1, 128], strides = [1, 1]} : vector<25x128xf32> to vector<1x128xf32>
    %303 = vector.shape_cast %302 : vector<1x128xf32> to vector<128xf32>
    %304 = vector.shape_cast %303 : vector<128xf32> to vector<1x128xf32>
    %305 = vector.broadcast %304 : vector<1x128xf32> to vector<16x128xf32>
    %306 = arith.mulf %301, %305 : vector<16x128xf32>
    %307 = arith.addf %300, %306 : vector<16x128xf32>
    %c8_i32_44 = arith.constant 8 : i32
    %308 = tpu.dynamic_rotate %295 by %c8_i32_44 dim 1 : vector<16x128xf32>, i32 -> vector<16x128xf32>
    %309 = vector.extract_strided_slice %293 {offsets = [1, 0], sizes = [1, 128], strides = [1, 1]} : vector<25x128xf32> to vector<1x128xf32>
    %310 = vector.shape_cast %309 : vector<1x128xf32> to vector<128xf32>
    %311 = vector.shape_cast %310 : vector<128xf32> to vector<1x128xf32>
    %312 = vector.broadcast %311 : vector<1x128xf32> to vector<16x128xf32>
    %313 = arith.mulf %308, %312 : vector<16x128xf32>
    %314 = arith.addf %307, %313 : vector<16x128xf32>
    %c120_i32_45 = arith.constant 120 : i32
    %315 = tpu.dynamic_rotate %295 by %c120_i32_45 dim 1 : vector<16x128xf32>, i32 -> vector<16x128xf32>
    %316 = vector.extract_strided_slice %293 {offsets = [3, 0], sizes = [1, 128], strides = [1, 1]} : vector<25x128xf32> to vector<1x128xf32>
    %317 = vector.shape_cast %316 : vector<1x128xf32> to vector<128xf32>
    %318 = vector.shape_cast %317 : vector<128xf32> to vector<1x128xf32>
    %319 = vector.broadcast %318 : vector<1x128xf32> to vector<16x128xf32>
    %320 = arith.mulf %315, %319 : vector<16x128xf32>
    %321 = arith.addf %314, %320 : vector<16x128xf32>
    %c112_i32_46 = arith.constant 112 : i32
    %322 = tpu.dynamic_rotate %295 by %c112_i32_46 dim 1 : vector<16x128xf32>, i32 -> vector<16x128xf32>
    %323 = vector.extract_strided_slice %293 {offsets = [4, 0], sizes = [1, 128], strides = [1, 1]} : vector<25x128xf32> to vector<1x128xf32>
    %324 = vector.shape_cast %323 : vector<1x128xf32> to vector<128xf32>
    %325 = vector.shape_cast %324 : vector<128xf32> to vector<1x128xf32>
    %326 = vector.broadcast %325 : vector<1x128xf32> to vector<16x128xf32>
    %327 = arith.mulf %322, %326 : vector<16x128xf32>
    %328 = arith.addf %321, %327 : vector<16x128xf32>
    %c1_47 = arith.constant 1 : index
    %c0_48 = arith.constant 0 : index
    %329 = vector.load %arg9[%c1_47, %c0_48] : memref<20x128xf32, #tpu.memory_space<vmem>>, vector<16x128xf32>
    %330 = vector.extract_strided_slice %293 {offsets = [7, 0], sizes = [1, 128], strides = [1, 1]} : vector<25x128xf32> to vector<1x128xf32>
    %331 = vector.shape_cast %330 : vector<1x128xf32> to vector<128xf32>
    %332 = vector.shape_cast %331 : vector<128xf32> to vector<1x128xf32>
    %333 = vector.broadcast %332 : vector<1x128xf32> to vector<16x128xf32>
    %334 = arith.mulf %329, %333 : vector<16x128xf32>
    %c16_i32_49 = arith.constant 16 : i32
    %335 = tpu.dynamic_rotate %329 by %c16_i32_49 dim 1 : vector<16x128xf32>, i32 -> vector<16x128xf32>
    %336 = vector.extract_strided_slice %293 {offsets = [5, 0], sizes = [1, 128], strides = [1, 1]} : vector<25x128xf32> to vector<1x128xf32>
    %337 = vector.shape_cast %336 : vector<1x128xf32> to vector<128xf32>
    %338 = vector.shape_cast %337 : vector<128xf32> to vector<1x128xf32>
    %339 = vector.broadcast %338 : vector<1x128xf32> to vector<16x128xf32>
    %340 = arith.mulf %335, %339 : vector<16x128xf32>
    %341 = arith.addf %334, %340 : vector<16x128xf32>
    %c8_i32_50 = arith.constant 8 : i32
    %342 = tpu.dynamic_rotate %329 by %c8_i32_50 dim 1 : vector<16x128xf32>, i32 -> vector<16x128xf32>
    %343 = vector.extract_strided_slice %293 {offsets = [6, 0], sizes = [1, 128], strides = [1, 1]} : vector<25x128xf32> to vector<1x128xf32>
    %344 = vector.shape_cast %343 : vector<1x128xf32> to vector<128xf32>
    %345 = vector.shape_cast %344 : vector<128xf32> to vector<1x128xf32>
    %346 = vector.broadcast %345 : vector<1x128xf32> to vector<16x128xf32>
    %347 = arith.mulf %342, %346 : vector<16x128xf32>
    %348 = arith.addf %341, %347 : vector<16x128xf32>
    %c120_i32_51 = arith.constant 120 : i32
    %349 = tpu.dynamic_rotate %329 by %c120_i32_51 dim 1 : vector<16x128xf32>, i32 -> vector<16x128xf32>
    %350 = vector.extract_strided_slice %293 {offsets = [8, 0], sizes = [1, 128], strides = [1, 1]} : vector<25x128xf32> to vector<1x128xf32>
    %351 = vector.shape_cast %350 : vector<1x128xf32> to vector<128xf32>
    %352 = vector.shape_cast %351 : vector<128xf32> to vector<1x128xf32>
    %353 = vector.broadcast %352 : vector<1x128xf32> to vector<16x128xf32>
    %354 = arith.mulf %349, %353 : vector<16x128xf32>
    %355 = arith.addf %348, %354 : vector<16x128xf32>
    %c112_i32_52 = arith.constant 112 : i32
    %356 = tpu.dynamic_rotate %329 by %c112_i32_52 dim 1 : vector<16x128xf32>, i32 -> vector<16x128xf32>
    %357 = vector.extract_strided_slice %293 {offsets = [9, 0], sizes = [1, 128], strides = [1, 1]} : vector<25x128xf32> to vector<1x128xf32>
    %358 = vector.shape_cast %357 : vector<1x128xf32> to vector<128xf32>
    %359 = vector.shape_cast %358 : vector<128xf32> to vector<1x128xf32>
    %360 = vector.broadcast %359 : vector<1x128xf32> to vector<16x128xf32>
    %361 = arith.mulf %356, %360 : vector<16x128xf32>
    %362 = arith.addf %355, %361 : vector<16x128xf32>
    %363 = arith.addf %328, %362 : vector<16x128xf32>
    %c2_53 = arith.constant 2 : index
    %c0_54 = arith.constant 0 : index
    %364 = vector.load %arg9[%c2_53, %c0_54] : memref<20x128xf32, #tpu.memory_space<vmem>>, vector<16x128xf32>
    %365 = vector.extract_strided_slice %293 {offsets = [12, 0], sizes = [1, 128], strides = [1, 1]} : vector<25x128xf32> to vector<1x128xf32>
    %366 = vector.shape_cast %365 : vector<1x128xf32> to vector<128xf32>
    %367 = vector.shape_cast %366 : vector<128xf32> to vector<1x128xf32>
    %368 = vector.broadcast %367 : vector<1x128xf32> to vector<16x128xf32>
    %369 = arith.mulf %364, %368 : vector<16x128xf32>
    %c16_i32_55 = arith.constant 16 : i32
    %370 = tpu.dynamic_rotate %364 by %c16_i32_55 dim 1 : vector<16x128xf32>, i32 -> vector<16x128xf32>
    %371 = vector.extract_strided_slice %293 {offsets = [10, 0], sizes = [1, 128], strides = [1, 1]} : vector<25x128xf32> to vector<1x128xf32>
    %372 = vector.shape_cast %371 : vector<1x128xf32> to vector<128xf32>
    %373 = vector.shape_cast %372 : vector<128xf32> to vector<1x128xf32>
    %374 = vector.broadcast %373 : vector<1x128xf32> to vector<16x128xf32>
    %375 = arith.mulf %370, %374 : vector<16x128xf32>
    %376 = arith.addf %369, %375 : vector<16x128xf32>
    %c8_i32_56 = arith.constant 8 : i32
    %377 = tpu.dynamic_rotate %364 by %c8_i32_56 dim 1 : vector<16x128xf32>, i32 -> vector<16x128xf32>
    %378 = vector.extract_strided_slice %293 {offsets = [11, 0], sizes = [1, 128], strides = [1, 1]} : vector<25x128xf32> to vector<1x128xf32>
    %379 = vector.shape_cast %378 : vector<1x128xf32> to vector<128xf32>
    %380 = vector.shape_cast %379 : vector<128xf32> to vector<1x128xf32>
    %381 = vector.broadcast %380 : vector<1x128xf32> to vector<16x128xf32>
    %382 = arith.mulf %377, %381 : vector<16x128xf32>
    %383 = arith.addf %376, %382 : vector<16x128xf32>
    %c120_i32_57 = arith.constant 120 : i32
    %384 = tpu.dynamic_rotate %364 by %c120_i32_57 dim 1 : vector<16x128xf32>, i32 -> vector<16x128xf32>
    %385 = vector.extract_strided_slice %293 {offsets = [13, 0], sizes = [1, 128], strides = [1, 1]} : vector<25x128xf32> to vector<1x128xf32>
    %386 = vector.shape_cast %385 : vector<1x128xf32> to vector<128xf32>
    %387 = vector.shape_cast %386 : vector<128xf32> to vector<1x128xf32>
    %388 = vector.broadcast %387 : vector<1x128xf32> to vector<16x128xf32>
    %389 = arith.mulf %384, %388 : vector<16x128xf32>
    %390 = arith.addf %383, %389 : vector<16x128xf32>
    %c112_i32_58 = arith.constant 112 : i32
    %391 = tpu.dynamic_rotate %364 by %c112_i32_58 dim 1 : vector<16x128xf32>, i32 -> vector<16x128xf32>
    %392 = vector.extract_strided_slice %293 {offsets = [14, 0], sizes = [1, 128], strides = [1, 1]} : vector<25x128xf32> to vector<1x128xf32>
    %393 = vector.shape_cast %392 : vector<1x128xf32> to vector<128xf32>
    %394 = vector.shape_cast %393 : vector<128xf32> to vector<1x128xf32>
    %395 = vector.broadcast %394 : vector<1x128xf32> to vector<16x128xf32>
    %396 = arith.mulf %391, %395 : vector<16x128xf32>
    %397 = arith.addf %390, %396 : vector<16x128xf32>
    %398 = arith.addf %363, %397 : vector<16x128xf32>
    %c3_59 = arith.constant 3 : index
    %c0_60 = arith.constant 0 : index
    %399 = vector.load %arg9[%c3_59, %c0_60] : memref<20x128xf32, #tpu.memory_space<vmem>>, vector<16x128xf32>
    %400 = vector.extract_strided_slice %293 {offsets = [17, 0], sizes = [1, 128], strides = [1, 1]} : vector<25x128xf32> to vector<1x128xf32>
    %401 = vector.shape_cast %400 : vector<1x128xf32> to vector<128xf32>
    %402 = vector.shape_cast %401 : vector<128xf32> to vector<1x128xf32>
    %403 = vector.broadcast %402 : vector<1x128xf32> to vector<16x128xf32>
    %404 = arith.mulf %399, %403 : vector<16x128xf32>
    %c16_i32_61 = arith.constant 16 : i32
    %405 = tpu.dynamic_rotate %399 by %c16_i32_61 dim 1 : vector<16x128xf32>, i32 -> vector<16x128xf32>
    %406 = vector.extract_strided_slice %293 {offsets = [15, 0], sizes = [1, 128], strides = [1, 1]} : vector<25x128xf32> to vector<1x128xf32>
    %407 = vector.shape_cast %406 : vector<1x128xf32> to vector<128xf32>
    %408 = vector.shape_cast %407 : vector<128xf32> to vector<1x128xf32>
    %409 = vector.broadcast %408 : vector<1x128xf32> to vector<16x128xf32>
    %410 = arith.mulf %405, %409 : vector<16x128xf32>
    %411 = arith.addf %404, %410 : vector<16x128xf32>
    %c8_i32_62 = arith.constant 8 : i32
    %412 = tpu.dynamic_rotate %399 by %c8_i32_62 dim 1 : vector<16x128xf32>, i32 -> vector<16x128xf32>
    %413 = vector.extract_strided_slice %293 {offsets = [16, 0], sizes = [1, 128], strides = [1, 1]} : vector<25x128xf32> to vector<1x128xf32>
    %414 = vector.shape_cast %413 : vector<1x128xf32> to vector<128xf32>
    %415 = vector.shape_cast %414 : vector<128xf32> to vector<1x128xf32>
    %416 = vector.broadcast %415 : vector<1x128xf32> to vector<16x128xf32>
    %417 = arith.mulf %412, %416 : vector<16x128xf32>
    %418 = arith.addf %411, %417 : vector<16x128xf32>
    %c120_i32_63 = arith.constant 120 : i32
    %419 = tpu.dynamic_rotate %399 by %c120_i32_63 dim 1 : vector<16x128xf32>, i32 -> vector<16x128xf32>
    %420 = vector.extract_strided_slice %293 {offsets = [18, 0], sizes = [1, 128], strides = [1, 1]} : vector<25x128xf32> to vector<1x128xf32>
    %421 = vector.shape_cast %420 : vector<1x128xf32> to vector<128xf32>
    %422 = vector.shape_cast %421 : vector<128xf32> to vector<1x128xf32>
    %423 = vector.broadcast %422 : vector<1x128xf32> to vector<16x128xf32>
    %424 = arith.mulf %419, %423 : vector<16x128xf32>
    %425 = arith.addf %418, %424 : vector<16x128xf32>
    %c112_i32_64 = arith.constant 112 : i32
    %426 = tpu.dynamic_rotate %399 by %c112_i32_64 dim 1 : vector<16x128xf32>, i32 -> vector<16x128xf32>
    %427 = vector.extract_strided_slice %293 {offsets = [19, 0], sizes = [1, 128], strides = [1, 1]} : vector<25x128xf32> to vector<1x128xf32>
    %428 = vector.shape_cast %427 : vector<1x128xf32> to vector<128xf32>
    %429 = vector.shape_cast %428 : vector<128xf32> to vector<1x128xf32>
    %430 = vector.broadcast %429 : vector<1x128xf32> to vector<16x128xf32>
    %431 = arith.mulf %426, %430 : vector<16x128xf32>
    %432 = arith.addf %425, %431 : vector<16x128xf32>
    %433 = arith.addf %398, %432 : vector<16x128xf32>
    %c4_65 = arith.constant 4 : index
    %c0_66 = arith.constant 0 : index
    %434 = vector.load %arg9[%c4_65, %c0_66] : memref<20x128xf32, #tpu.memory_space<vmem>>, vector<16x128xf32>
    %435 = vector.extract_strided_slice %293 {offsets = [22, 0], sizes = [1, 128], strides = [1, 1]} : vector<25x128xf32> to vector<1x128xf32>
    %436 = vector.shape_cast %435 : vector<1x128xf32> to vector<128xf32>
    %437 = vector.shape_cast %436 : vector<128xf32> to vector<1x128xf32>
    %438 = vector.broadcast %437 : vector<1x128xf32> to vector<16x128xf32>
    %439 = arith.mulf %434, %438 : vector<16x128xf32>
    %c16_i32_67 = arith.constant 16 : i32
    %440 = tpu.dynamic_rotate %434 by %c16_i32_67 dim 1 : vector<16x128xf32>, i32 -> vector<16x128xf32>
    %441 = vector.extract_strided_slice %293 {offsets = [20, 0], sizes = [1, 128], strides = [1, 1]} : vector<25x128xf32> to vector<1x128xf32>
    %442 = vector.shape_cast %441 : vector<1x128xf32> to vector<128xf32>
    %443 = vector.shape_cast %442 : vector<128xf32> to vector<1x128xf32>
    %444 = vector.broadcast %443 : vector<1x128xf32> to vector<16x128xf32>
    %445 = arith.mulf %440, %444 : vector<16x128xf32>
    %446 = arith.addf %439, %445 : vector<16x128xf32>
    %c8_i32_68 = arith.constant 8 : i32
    %447 = tpu.dynamic_rotate %434 by %c8_i32_68 dim 1 : vector<16x128xf32>, i32 -> vector<16x128xf32>
    %448 = vector.extract_strided_slice %293 {offsets = [21, 0], sizes = [1, 128], strides = [1, 1]} : vector<25x128xf32> to vector<1x128xf32>
    %449 = vector.shape_cast %448 : vector<1x128xf32> to vector<128xf32>
    %450 = vector.shape_cast %449 : vector<128xf32> to vector<1x128xf32>
    %451 = vector.broadcast %450 : vector<1x128xf32> to vector<16x128xf32>
    %452 = arith.mulf %447, %451 : vector<16x128xf32>
    %453 = arith.addf %446, %452 : vector<16x128xf32>
    %c120_i32_69 = arith.constant 120 : i32
    %454 = tpu.dynamic_rotate %434 by %c120_i32_69 dim 1 : vector<16x128xf32>, i32 -> vector<16x128xf32>
    %455 = vector.extract_strided_slice %293 {offsets = [23, 0], sizes = [1, 128], strides = [1, 1]} : vector<25x128xf32> to vector<1x128xf32>
    %456 = vector.shape_cast %455 : vector<1x128xf32> to vector<128xf32>
    %457 = vector.shape_cast %456 : vector<128xf32> to vector<1x128xf32>
    %458 = vector.broadcast %457 : vector<1x128xf32> to vector<16x128xf32>
    %459 = arith.mulf %454, %458 : vector<16x128xf32>
    %460 = arith.addf %453, %459 : vector<16x128xf32>
    %c112_i32_70 = arith.constant 112 : i32
    %461 = tpu.dynamic_rotate %434 by %c112_i32_70 dim 1 : vector<16x128xf32>, i32 -> vector<16x128xf32>
    %462 = vector.extract_strided_slice %293 {offsets = [24, 0], sizes = [1, 128], strides = [1, 1]} : vector<25x128xf32> to vector<1x128xf32>
    %463 = vector.shape_cast %462 : vector<1x128xf32> to vector<128xf32>
    %464 = vector.shape_cast %463 : vector<128xf32> to vector<1x128xf32>
    %465 = vector.broadcast %464 : vector<1x128xf32> to vector<16x128xf32>
    %466 = arith.mulf %461, %465 : vector<16x128xf32>
    %467 = arith.addf %460, %466 : vector<16x128xf32>
    %468 = arith.addf %433, %467 : vector<16x128xf32>
    %469 = vector.extract_strided_slice %294 {offsets = [7, 0], sizes = [1, 128], strides = [1, 1]} : vector<15x128xf32> to vector<1x128xf32>
    %470 = vector.shape_cast %469 : vector<1x128xf32> to vector<128xf32>
    %471 = vector.shape_cast %470 : vector<128xf32> to vector<1x128xf32>
    %472 = vector.broadcast %471 : vector<1x128xf32> to vector<16x128xf32>
    %473 = arith.mulf %468, %472 : vector<16x128xf32>
    %c121_i32_71 = arith.constant 121 : i32
    %474 = tpu.dynamic_rotate %468 by %c121_i32_71 dim 1 : vector<16x128xf32>, i32 -> vector<16x128xf32>
    %475 = vector.extract_strided_slice %294 {offsets = [0, 0], sizes = [1, 128], strides = [1, 1]} : vector<15x128xf32> to vector<1x128xf32>
    %476 = vector.shape_cast %475 : vector<1x128xf32> to vector<128xf32>
    %477 = vector.shape_cast %476 : vector<128xf32> to vector<1x128xf32>
    %478 = vector.broadcast %477 : vector<1x128xf32> to vector<16x128xf32>
    %479 = arith.mulf %474, %478 : vector<16x128xf32>
    %480 = arith.addf %473, %479 : vector<16x128xf32>
    %c122_i32_72 = arith.constant 122 : i32
    %481 = tpu.dynamic_rotate %468 by %c122_i32_72 dim 1 : vector<16x128xf32>, i32 -> vector<16x128xf32>
    %482 = vector.extract_strided_slice %294 {offsets = [1, 0], sizes = [1, 128], strides = [1, 1]} : vector<15x128xf32> to vector<1x128xf32>
    %483 = vector.shape_cast %482 : vector<1x128xf32> to vector<128xf32>
    %484 = vector.shape_cast %483 : vector<128xf32> to vector<1x128xf32>
    %485 = vector.broadcast %484 : vector<1x128xf32> to vector<16x128xf32>
    %486 = arith.mulf %481, %485 : vector<16x128xf32>
    %487 = arith.addf %480, %486 : vector<16x128xf32>
    %c123_i32_73 = arith.constant 123 : i32
    %488 = tpu.dynamic_rotate %468 by %c123_i32_73 dim 1 : vector<16x128xf32>, i32 -> vector<16x128xf32>
    %489 = vector.extract_strided_slice %294 {offsets = [2, 0], sizes = [1, 128], strides = [1, 1]} : vector<15x128xf32> to vector<1x128xf32>
    %490 = vector.shape_cast %489 : vector<1x128xf32> to vector<128xf32>
    %491 = vector.shape_cast %490 : vector<128xf32> to vector<1x128xf32>
    %492 = vector.broadcast %491 : vector<1x128xf32> to vector<16x128xf32>
    %493 = arith.mulf %488, %492 : vector<16x128xf32>
    %494 = arith.addf %487, %493 : vector<16x128xf32>
    %c124_i32_74 = arith.constant 124 : i32
    %495 = tpu.dynamic_rotate %468 by %c124_i32_74 dim 1 : vector<16x128xf32>, i32 -> vector<16x128xf32>
    %496 = vector.extract_strided_slice %294 {offsets = [3, 0], sizes = [1, 128], strides = [1, 1]} : vector<15x128xf32> to vector<1x128xf32>
    %497 = vector.shape_cast %496 : vector<1x128xf32> to vector<128xf32>
    %498 = vector.shape_cast %497 : vector<128xf32> to vector<1x128xf32>
    %499 = vector.broadcast %498 : vector<1x128xf32> to vector<16x128xf32>
    %500 = arith.mulf %495, %499 : vector<16x128xf32>
    %501 = arith.addf %494, %500 : vector<16x128xf32>
    %c125_i32_75 = arith.constant 125 : i32
    %502 = tpu.dynamic_rotate %468 by %c125_i32_75 dim 1 : vector<16x128xf32>, i32 -> vector<16x128xf32>
    %503 = vector.extract_strided_slice %294 {offsets = [4, 0], sizes = [1, 128], strides = [1, 1]} : vector<15x128xf32> to vector<1x128xf32>
    %504 = vector.shape_cast %503 : vector<1x128xf32> to vector<128xf32>
    %505 = vector.shape_cast %504 : vector<128xf32> to vector<1x128xf32>
    %506 = vector.broadcast %505 : vector<1x128xf32> to vector<16x128xf32>
    %507 = arith.mulf %502, %506 : vector<16x128xf32>
    %508 = arith.addf %501, %507 : vector<16x128xf32>
    %c126_i32_76 = arith.constant 126 : i32
    %509 = tpu.dynamic_rotate %468 by %c126_i32_76 dim 1 : vector<16x128xf32>, i32 -> vector<16x128xf32>
    %510 = vector.extract_strided_slice %294 {offsets = [5, 0], sizes = [1, 128], strides = [1, 1]} : vector<15x128xf32> to vector<1x128xf32>
    %511 = vector.shape_cast %510 : vector<1x128xf32> to vector<128xf32>
    %512 = vector.shape_cast %511 : vector<128xf32> to vector<1x128xf32>
    %513 = vector.broadcast %512 : vector<1x128xf32> to vector<16x128xf32>
    %514 = arith.mulf %509, %513 : vector<16x128xf32>
    %515 = arith.addf %508, %514 : vector<16x128xf32>
    %c127_i32_77 = arith.constant 127 : i32
    %516 = tpu.dynamic_rotate %468 by %c127_i32_77 dim 1 : vector<16x128xf32>, i32 -> vector<16x128xf32>
    %517 = vector.extract_strided_slice %294 {offsets = [6, 0], sizes = [1, 128], strides = [1, 1]} : vector<15x128xf32> to vector<1x128xf32>
    %518 = vector.shape_cast %517 : vector<1x128xf32> to vector<128xf32>
    %519 = vector.shape_cast %518 : vector<128xf32> to vector<1x128xf32>
    %520 = vector.broadcast %519 : vector<1x128xf32> to vector<16x128xf32>
    %521 = arith.mulf %516, %520 : vector<16x128xf32>
    %522 = arith.addf %515, %521 : vector<16x128xf32>
    %c1_i32_78 = arith.constant 1 : i32
    %523 = tpu.dynamic_rotate %468 by %c1_i32_78 dim 1 : vector<16x128xf32>, i32 -> vector<16x128xf32>
    %524 = vector.extract_strided_slice %294 {offsets = [8, 0], sizes = [1, 128], strides = [1, 1]} : vector<15x128xf32> to vector<1x128xf32>
    %525 = vector.shape_cast %524 : vector<1x128xf32> to vector<128xf32>
    %526 = vector.shape_cast %525 : vector<128xf32> to vector<1x128xf32>
    %527 = vector.broadcast %526 : vector<1x128xf32> to vector<16x128xf32>
    %528 = arith.mulf %523, %527 : vector<16x128xf32>
    %529 = arith.addf %522, %528 : vector<16x128xf32>
    %c2_i32_79 = arith.constant 2 : i32
    %530 = tpu.dynamic_rotate %468 by %c2_i32_79 dim 1 : vector<16x128xf32>, i32 -> vector<16x128xf32>
    %531 = vector.extract_strided_slice %294 {offsets = [9, 0], sizes = [1, 128], strides = [1, 1]} : vector<15x128xf32> to vector<1x128xf32>
    %532 = vector.shape_cast %531 : vector<1x128xf32> to vector<128xf32>
    %533 = vector.shape_cast %532 : vector<128xf32> to vector<1x128xf32>
    %534 = vector.broadcast %533 : vector<1x128xf32> to vector<16x128xf32>
    %535 = arith.mulf %530, %534 : vector<16x128xf32>
    %536 = arith.addf %529, %535 : vector<16x128xf32>
    %c3_i32_80 = arith.constant 3 : i32
    %537 = tpu.dynamic_rotate %468 by %c3_i32_80 dim 1 : vector<16x128xf32>, i32 -> vector<16x128xf32>
    %538 = vector.extract_strided_slice %294 {offsets = [10, 0], sizes = [1, 128], strides = [1, 1]} : vector<15x128xf32> to vector<1x128xf32>
    %539 = vector.shape_cast %538 : vector<1x128xf32> to vector<128xf32>
    %540 = vector.shape_cast %539 : vector<128xf32> to vector<1x128xf32>
    %541 = vector.broadcast %540 : vector<1x128xf32> to vector<16x128xf32>
    %542 = arith.mulf %537, %541 : vector<16x128xf32>
    %543 = arith.addf %536, %542 : vector<16x128xf32>
    %c4_i32_81 = arith.constant 4 : i32
    %544 = tpu.dynamic_rotate %468 by %c4_i32_81 dim 1 : vector<16x128xf32>, i32 -> vector<16x128xf32>
    %545 = vector.extract_strided_slice %294 {offsets = [11, 0], sizes = [1, 128], strides = [1, 1]} : vector<15x128xf32> to vector<1x128xf32>
    %546 = vector.shape_cast %545 : vector<1x128xf32> to vector<128xf32>
    %547 = vector.shape_cast %546 : vector<128xf32> to vector<1x128xf32>
    %548 = vector.broadcast %547 : vector<1x128xf32> to vector<16x128xf32>
    %549 = arith.mulf %544, %548 : vector<16x128xf32>
    %550 = arith.addf %543, %549 : vector<16x128xf32>
    %c5_i32_82 = arith.constant 5 : i32
    %551 = tpu.dynamic_rotate %468 by %c5_i32_82 dim 1 : vector<16x128xf32>, i32 -> vector<16x128xf32>
    %552 = vector.extract_strided_slice %294 {offsets = [12, 0], sizes = [1, 128], strides = [1, 1]} : vector<15x128xf32> to vector<1x128xf32>
    %553 = vector.shape_cast %552 : vector<1x128xf32> to vector<128xf32>
    %554 = vector.shape_cast %553 : vector<128xf32> to vector<1x128xf32>
    %555 = vector.broadcast %554 : vector<1x128xf32> to vector<16x128xf32>
    %556 = arith.mulf %551, %555 : vector<16x128xf32>
    %557 = arith.addf %550, %556 : vector<16x128xf32>
    %c6_i32_83 = arith.constant 6 : i32
    %558 = tpu.dynamic_rotate %468 by %c6_i32_83 dim 1 : vector<16x128xf32>, i32 -> vector<16x128xf32>
    %559 = vector.extract_strided_slice %294 {offsets = [13, 0], sizes = [1, 128], strides = [1, 1]} : vector<15x128xf32> to vector<1x128xf32>
    %560 = vector.shape_cast %559 : vector<1x128xf32> to vector<128xf32>
    %561 = vector.shape_cast %560 : vector<128xf32> to vector<1x128xf32>
    %562 = vector.broadcast %561 : vector<1x128xf32> to vector<16x128xf32>
    %563 = arith.mulf %558, %562 : vector<16x128xf32>
    %564 = arith.addf %557, %563 : vector<16x128xf32>
    %c7_i32_84 = arith.constant 7 : i32
    %565 = tpu.dynamic_rotate %468 by %c7_i32_84 dim 1 : vector<16x128xf32>, i32 -> vector<16x128xf32>
    %566 = vector.extract_strided_slice %294 {offsets = [14, 0], sizes = [1, 128], strides = [1, 1]} : vector<15x128xf32> to vector<1x128xf32>
    %567 = vector.shape_cast %566 : vector<1x128xf32> to vector<128xf32>
    %568 = vector.shape_cast %567 : vector<128xf32> to vector<1x128xf32>
    %569 = vector.broadcast %568 : vector<1x128xf32> to vector<16x128xf32>
    %570 = arith.mulf %565, %569 : vector<16x128xf32>
    %571 = arith.addf %564, %570 : vector<16x128xf32>
    %c0_85 = arith.constant 0 : index
    %c0_86 = arith.constant 0 : index
    %572 = vector.load %arg7[%c0_85, %c0_86] : memref<1x128xf32, #tpu.memory_space<vmem>>, vector<1x128xf32>
    %573 = vector.shape_cast %572 : vector<1x128xf32> to vector<128xf32>
    %574 = vector.shape_cast %573 : vector<128xf32> to vector<1x128xf32>
    %575 = vector.broadcast %574 : vector<1x128xf32> to vector<16x128xf32>
    %576 = arith.addf %571, %575 : vector<16x128xf32>
    %577 = arith.addf %576, %291 : vector<16x128xf32>
    %cst_87 = arith.constant 0.000000e+00 : f32
    %578 = vector.broadcast %cst_87 : f32 to vector<16x128xf32>
    %579 = arith.maximumf %577, %578 : vector<16x128xf32>
    %c0_88 = arith.constant 0 : index
    %c0_89 = arith.constant 0 : index
    %c0_90 = arith.constant 0 : index
    %580 = vector.load %arg8[%c0_88, %c0_89, %c0_90] : memref<1x16x128xf32, #tpu.memory_space<vmem>>, vector<1x16x128xf32>
    %581 = vector.shape_cast %580 : vector<1x16x128xf32> to vector<16x128xf32>
    %582 = vector.shape_cast %579 : vector<16x128xf32> to vector<1x16x128xf32>
    tpu.vector_store %arg8[%c0_88, %c0_89, %c0_90], %582 {strides = array<i32>} : memref<1x16x128xf32, #tpu.memory_space<vmem>>, vector<1x16x128xf32>,
    return
  }
  func.func @transform_0(%arg0: i32) -> (i32, i32, i32) {
    %c0_i32 = arith.constant 0 : i32
    %c0_i32_0 = arith.constant 0 : i32
    %c0_i32_1 = arith.constant 0 : i32
    return %arg0, %c0_i32, %c0_i32_0 : i32, i32, i32
  }
  func.func @transform_1(%arg0: i32) -> (i32, i32) {
    %c0_i32 = arith.constant 0 : i32
    %c0_i32_0 = arith.constant 0 : i32
    %c0_i32_1 = arith.constant 0 : i32
    return %c0_i32, %c0_i32_0 : i32, i32
  }
  func.func @transform_2(%arg0: i32) -> (i32, i32) {
    %c0_i32 = arith.constant 0 : i32
    %c0_i32_0 = arith.constant 0 : i32
    %c0_i32_1 = arith.constant 0 : i32
    return %c0_i32, %c0_i32_0 : i32, i32
  }
  func.func @transform_3(%arg0: i32) -> (i32, i32) {
    %c0_i32 = arith.constant 0 : i32
    %c0_i32_0 = arith.constant 0 : i32
    %c0_i32_1 = arith.constant 0 : i32
    return %c0_i32, %c0_i32_0 : i32, i32
  }
  func.func @transform_4(%arg0: i32) -> (i32, i32) {
    %c0_i32 = arith.constant 0 : i32
    %c0_i32_0 = arith.constant 0 : i32
    %c0_i32_1 = arith.constant 0 : i32
    return %c0_i32, %c0_i32_0 : i32, i32
  }
  func.func @transform_5(%arg0: i32) -> (i32, i32) {
    %c0_i32 = arith.constant 0 : i32
    %c0_i32_0 = arith.constant 0 : i32
    %c0_i32_1 = arith.constant 0 : i32
    return %c0_i32, %c0_i32_0 : i32, i32
  }
  func.func @transform_6(%arg0: i32) -> (i32, i32) {
    %c0_i32 = arith.constant 0 : i32
    %c0_i32_0 = arith.constant 0 : i32
    %c0_i32_1 = arith.constant 0 : i32
    return %c0_i32, %c0_i32_0 : i32, i32
  }
  func.func @transform_7(%arg0: i32) -> (i32, i32, i32) {
    %c0_i32 = arith.constant 0 : i32
    %c0_i32_0 = arith.constant 0 : i32
    %c0_i32_1 = arith.constant 0 : i32
    return %arg0, %c0_i32, %c0_i32_0 : i32, i32, i32
  }
}

</mosaic_0001>

<llo_original>
// kernel: tpu_custom_call.1
$region0: #{tpu_custom_call.1}
  #allocation0 [shape = 'u32[]', space=smem, size = 0x4, offset = 0x4, fixed_abs, tag = 'smem constant byte address 0x4 - core index']
  #allocation1 [shape = 'u32[144,128]{1,0:T(1,128)}', space=vmem, size = 0x12000, scoped, tag = 'internal scratch']
  #allocation2 [shape = 'f32[20,128]{1,0:T(8,128)}', space=vmem, size = 0x3000, scoped, tag = 'scratch operand']
  %s0 = inlined_call_operand.hbm [shape: f32[2,16,128], index: 0, kind: input, shape index: {}]
  %s1 = inlined_call_operand.hbm [shape: f32[25,128], index: 1, kind: input, shape index: {}]
  %s2 = inlined_call_operand.hbm [shape: f32[15,128], index: 2, kind: input, shape index: {}]
  %s3 = inlined_call_operand.vmem [shape: f32[1,128], index: 3, kind: input, shape index: {}]
  %s4 = inlined_call_operand.hbm [shape: f32[25,128], index: 4, kind: input, shape index: {}]
  %s5 = inlined_call_operand.hbm [shape: f32[15,128], index: 5, kind: input, shape index: {}]
  %s6 = inlined_call_operand.vmem [shape: f32[1,128], index: 6, kind: input, shape index: {}]
  %s7 = inlined_call_operand.hbm [shape: f32[2,16,128], index: 7, kind: output, shape index: {}]
  %s8 = sld [smem:[#allocation0]]
  $region81: #{tpu_custom_call.1} parent=0
    _
  %s10 = ssub.s32 1, %s8
  %s11 = scalar_select 0, %s10, %s8
  $region1: #{tpu_custom_call.1} parent=0
    #allocation3 [shape = 'u8[16384]{0}', space=vmem, size = 0x4000, scoped, tag = 'input window, operand 0']
    #allocation4 [shape = 's32[2]{0}', space=sflag, size = 0x8, scoped, tag = 'scoped memory for tpu_custom_call.1']
    #allocation5 [shape = 's32[2]{0}', space=sflag, size = 0x8, scoped, tag = 'scoped memory for tpu_custom_call.1']
    #allocation6 [shape = 'u8[16384]{0}', space=vmem, size = 0x4000, scoped, tag = 'input window, operand 1, single buffered']
    #allocation7 [shape = 's32[1]{0}', space=sflag, size = 0x4, scoped, tag = 'scoped memory for tpu_custom_call.1']
    #allocation8 [shape = 'u8[8192]{0}', space=vmem, size = 0x2000, scoped, tag = 'input window, operand 2, single buffered']
    #allocation9 [shape = 'u8[16384]{0}', space=vmem, size = 0x4000, scoped, tag = 'input window, operand 4, single buffered']
    #allocation10 [shape = 's32[1]{0}', space=sflag, size = 0x4, scoped, tag = 'scoped memory for tpu_custom_call.1']
    #allocation11 [shape = 'u8[8192]{0}', space=vmem, size = 0x2000, scoped, tag = 'input window, operand 5, single buffered']
    #allocation12 [shape = 'u8[16384]{0}', space=vmem, size = 0x4000, scoped, tag = 'output window, operand 0']
    %12 = vsyncpa [#allocation4], 0
    %s13 = scalar_lea.sflag [#allocation4], 1
    %14 = vsyncpa %s13, 0
    %15 = vsyncpa [#allocation7], 0
    %16 = vsyncpa [#allocation10], 0
    %17 = vsyncpa [#allocation5], 0
    %s18 = scalar_lea.sflag [#allocation5], 1
    %19 = vsyncpa %s18, 0
    loop: start=0, step=1, limit=4
    $region2: #{tpu_custom_call.1} parent=1 // loop_pre_header
      _
    $region3: #{tpu_custom_call.1} parent=1 // loop_header
      %s21 = sphi 0, %s25
      %p22 = scmp.ge.s32.totalorder %s21, 4
      %s31 = sphi 0, %s33
      %s34 = sphi 0, %s31
      %s35 = sphi 0, %s34
      %s51 = sphi 0, %s35
      %s55 = sphi 0, %s55
      %s57 = sphi 0, %s55
      %s58 = sphi 0, %s57
      %s72 = sphi 0, %s58
      %s76 = sphi 0, %s76
      %s78 = sphi 0, %s76
      %s79 = sphi 0, %s78
      %s93 = sphi 0, %s79
      %s97 = sphi 0, %s97
      %s99 = sphi 0, %s97
      %s100 = sphi 0, %s99
      %s114 = sphi 0, %s100
      %s118 = sphi 0, %s118
      %s120 = sphi 0, %s118
      %s121 = sphi 0, %s120
      %s135 = sphi 0, %s121
      %s139 = sphi 0, %s139
      %s141 = sphi 0, %s139
      %s142 = sphi 0, %s141
      %s156 = sphi 0, %s142
      %s160 = sphi 0, %s160
      %s162 = sphi 0, %s160
      %s163 = sphi 0, %s162
      %s177 = sphi 0, %s163
      %s183 = sphi 0, %s185
      %s186 = sphi 0, %s183
      %s187 = sphi 0, %s186
      %s203 = sphi 0, %s187
    $region4: #{tpu_custom_call.1} parent=1 // loop_header_branch
      %24 = sbr.rel (%p22) target = $region8
    $region5: #{tpu_custom_call.1} parent=1 // loop_body
      %s26 = ssub.s32 %s21, 1
      %s27 = ssub.s32 %s21, 2
      %s28 = sadd.s32 %s21, 1
      %s29 = ssub.s32 %s21, %s28
      %p30 = scmp.eq.s32.totalorder %s29, 0
      %s32 = sadd.s32 %s31, 1
      %s33 = scalar_select %p30, %s31, %s32
      %p36 = pneg %p30
      %p37 = scmp.eq.s32.totalorder %s21, 1
      %p38 = por %p36, %p37
      %p39 = scmp.ne.s32.totalorder %s31, %s34
      %p40 = scmp.eq.s32.totalorder %s21, 0
      %p41 = por %p39, %p40
      %p42 = scmp.ne.s32.totalorder %s31, %s34
      %p43 = scmp.eq.s32.totalorder %s26, 1
      %p44 = por %p42, %p43
      %p45 = scmp.ne.s32.totalorder %s34, %s35
      %p46 = scmp.eq.s32.totalorder %s26, 0
      %p47 = por %p45, %p46
      %p48 = scmp.ne.s32.totalorder %s34, %s35
      %p49 = scmp.eq.s32.totalorder %s27, 1
      %p50 = por %p48, %p49
      %p52 = scmp.ne.s32.totalorder %s35, %s51
      %p53 = scmp.eq.s32.totalorder %s27, 0
      %p54 = por %p52, %p53
      %s56 = sadd.s32 %s55, 1
      %p59 = scmp.eq.s32.totalorder %s21, 1
      %p60 = scmp.ne.s32.totalorder %s55, %s57
      %p61 = scmp.eq.s32.totalorder %s21, 0
      %p62 = por %p60, %p61
      %p63 = scmp.ne.s32.totalorder %s55, %s57
      %p64 = scmp.eq.s32.totalorder %s26, 1
      %p65 = por %p63, %p64
      %p66 = scmp.ne.s32.totalorder %s57, %s58
      %p67 = scmp.eq.s32.totalorder %s26, 0
      %p68 = por %p66, %p67
      %p69 = scmp.ne.s32.totalorder %s57, %s58
      %p70 = scmp.eq.s32.totalorder %s27, 1
      %p71 = por %p69, %p70
      %p73 = scmp.ne.s32.totalorder %s58, %s72
      %p74 = scmp.eq.s32.totalorder %s27, 0
      %p75 = por %p73, %p74
      %s77 = sadd.s32 %s76, 1
      %p80 = scmp.eq.s32.totalorder %s21, 1
      %p81 = scmp.ne.s32.totalorder %s76, %s78
      %p82 = scmp.eq.s32.totalorder %s21, 0
      %p83 = por %p81, %p82
      %p84 = scmp.ne.s32.totalorder %s76, %s78
      %p85 = scmp.eq.s32.totalorder %s26, 1
      %p86 = por %p84, %p85
      %p87 = scmp.ne.s32.totalorder %s78, %s79
      %p88 = scmp.eq.s32.totalorder %s26, 0
      %p89 = por %p87, %p88
      %p90 = scmp.ne.s32.totalorder %s78, %s79
      %p91 = scmp.eq.s32.totalorder %s27, 1
      %p92 = por %p90, %p91
      %p94 = scmp.ne.s32.totalorder %s79, %s93
      %p95 = scmp.eq.s32.totalorder %s27, 0
      %p96 = por %p94, %p95
      %s98 = sadd.s32 %s97, 1
      %p101 = scmp.eq.s32.totalorder %s21, 1
      %p102 = scmp.ne.s32.totalorder %s97, %s99
      %p103 = scmp.eq.s32.totalorder %s21, 0
      %p104 = por %p102, %p103
      %p105 = scmp.ne.s32.totalorder %s97, %s99
      %p106 = scmp.eq.s32.totalorder %s26, 1
      %p107 = por %p105, %p106
      %p108 = scmp.ne.s32.totalorder %s99, %s100
      %p109 = scmp.eq.s32.totalorder %s26, 0
      %p110 = por %p108, %p109
      %p111 = scmp.ne.s32.totalorder %s99, %s100
      %p112 = scmp.eq.s32.totalorder %s27, 1
      %p113 = por %p111, %p112
      %p115 = scmp.ne.s32.totalorder %s100, %s114
      %p116 = scmp.eq.s32.totalorder %s27, 0
      %p117 = por %p115, %p116
      %s119 = sadd.s32 %s118, 1
      %p122 = scmp.eq.s32.totalorder %s21, 1
      %p123 = scmp.ne.s32.totalorder %s118, %s120
      %p124 = scmp.eq.s32.totalorder %s21, 0
      %p125 = por %p123, %p124
      %p126 = scmp.ne.s32.totalorder %s118, %s120
      %p127 = scmp.eq.s32.totalorder %s26, 1
      %p128 = por %p126, %p127
      %p129 = scmp.ne.s32.totalorder %s120, %s121
      %p130 = scmp.eq.s32.totalorder %s26, 0
      %p131 = por %p129, %p130
      %p132 = scmp.ne.s32.totalorder %s120, %s121
      %p133 = scmp.eq.s32.totalorder %s27, 1
      %p134 = por %p132, %p133
      %p136 = scmp.ne.s32.totalorder %s121, %s135
      %p137 = scmp.eq.s32.totalorder %s27, 0
      %p138 = por %p136, %p137
      %s140 = sadd.s32 %s139, 1
      %p143 = scmp.eq.s32.totalorder %s21, 1
      %p144 = scmp.ne.s32.totalorder %s139, %s141
      %p145 = scmp.eq.s32.totalorder %s21, 0
      %p146 = por %p144, %p145
      %p147 = scmp.ne.s32.totalorder %s139, %s141
      %p148 = scmp.eq.s32.totalorder %s26, 1
      %p149 = por %p147, %p148
      %p150 = scmp.ne.s32.totalorder %s141, %s142
      %p151 = scmp.eq.s32.totalorder %s26, 0
      %p152 = por %p150, %p151
      %p153 = scmp.ne.s32.totalorder %s141, %s142
      %p154 = scmp.eq.s32.totalorder %s27, 1
      %p155 = por %p153, %p154
      %p157 = scmp.ne.s32.totalorder %s142, %s156
      %p158 = scmp.eq.s32.totalorder %s27, 0
      %p159 = por %p157, %p158
      %s161 = sadd.s32 %s160, 1
      %p164 = scmp.eq.s32.totalorder %s21, 1
      %p165 = scmp.ne.s32.totalorder %s160, %s162
      %p166 = scmp.eq.s32.totalorder %s21, 0
      %p167 = por %p165, %p166
      %p168 = scmp.ne.s32.totalorder %s160, %s162
      %p169 = scmp.eq.s32.totalorder %s26, 1
      %p170 = por %p168, %p169
      %p171 = scmp.ne.s32.totalorder %s162, %s163
      %p172 = scmp.eq.s32.totalorder %s26, 0
      %p173 = por %p171, %p172
      %p174 = scmp.ne.s32.totalorder %s162, %s163
      %p175 = scmp.eq.s32.totalorder %s27, 1
      %p176 = por %p174, %p175
      %p178 = scmp.ne.s32.totalorder %s163, %s177
      %p179 = scmp.eq.s32.totalorder %s27, 0
      %p180 = por %p178, %p179
      %s181 = ssub.s32 %s21, %s28
      %p182 = scmp.eq.s32.totalorder %s181, 0
      %s184 = sadd.s32 %s183, 1
      %s185 = scalar_select %p182, %s183, %s184
      %p188 = pneg %p182
      %p189 = scmp.eq.s32.totalorder %s21, 1
      %p190 = por %p188, %p189
      %p191 = scmp.ne.s32.totalorder %s183, %s186
      %p192 = scmp.eq.s32.totalorder %s21, 0
      %p193 = por %p191, %p192
      %p194 = scmp.ne.s32.totalorder %s183, %s186
      %p195 = scmp.eq.s32.totalorder %s26, 1
      %p196 = por %p194, %p195
      %p197 = scmp.ne.s32.totalorder %s186, %s187
      %p198 = scmp.eq.s32.totalorder %s26, 0
      %p199 = por %p197, %p198
      %p200 = scmp.ne.s32.totalorder %s186, %s187
      %p201 = scmp.eq.s32.totalorder %s27, 1
      %p202 = por %p200, %p201
      %p204 = scmp.ne.s32.totalorder %s187, %s203
      %p205 = scmp.eq.s32.totalorder %s27, 0
      %p206 = por %p204, %p205
      %p207 = scmp.le.s32.totalorder 1, %s21
      %p208 = scmp.lt.s32.totalorder %s21, 3
      %p209 = pnand %p207, %p208
      %p210 = pneg %p209
      // Predicated region
      $region9: #{tpu_custom_call.1} parent=5 // pred_check
        _
      $region10: #{tpu_custom_call.1} parent=5 // pred_check_branch
        %212 = sbr.rel (%p209) target = $region12
      $region11: #{tpu_custom_call.1} parent=5 // pred_region
        %s213 = ssub.s32 %s21, 1
        // Predicated region
        $region13: #{tpu_custom_call.1} parent=11 // pred_check
          %p214 = pneg %p68
        $region14: #{tpu_custom_call.1} parent=11 // pred_check_branch
          %216 = sbr.rel (%p214) target = $region16
        $region15: #{tpu_custom_call.1} parent=11 // pred_region
          %s218 = ssub.s32 512, 512
          %219 = vsyncadd [#allocation7], %s218
          %s220 = sshll.u32 [#allocation6], 4
          %s221 = int_to_ptr.vmem [resolvable:$true] %s220
          %226 = dma.hbm_to_vmem [thread:$0]  %s1, 512, %s221, [#allocation7], 128, 128, 8
        $region16: #{tpu_custom_call.1} parent=11 // pred_fallthru
          _
        // Predicated region
        $region17: #{tpu_custom_call.1} parent=11 // pred_check
          %p227 = pneg %p89
        $region18: #{tpu_custom_call.1} parent=11 // pred_check_branch
          %229 = sbr.rel (%p227) target = $region20
        $region19: #{tpu_custom_call.1} parent=11 // pred_region
          %s231 = ssub.s32 256, 256
          %232 = vsyncadd [#allocation7], %s231
          %s233 = sshll.u32 [#allocation8], 4
          %s234 = int_to_ptr.vmem [resolvable:$true] %s233
          %239 = dma.hbm_to_vmem [thread:$0]  %s2, 256, %s234, [#allocation7], 128, 128, 8
        $region20: #{tpu_custom_call.1} parent=11 // pred_fallthru
          _
        // Predicated region
        $region21: #{tpu_custom_call.1} parent=11 // pred_check
          %p240 = pneg %p110
        $region22: #{tpu_custom_call.1} parent=11 // pred_check_branch
          %242 = sbr.rel (%p240) target = $region24
        $region23: #{tpu_custom_call.1} parent=11 // pred_region
          _
        $region24: #{tpu_custom_call.1} parent=11 // pred_fallthru
          _
        // Predicated region
        $region25: #{tpu_custom_call.1} parent=11 // pred_check
          %p243 = pneg %p131
        $region26: #{tpu_custom_call.1} parent=11 // pred_check_branch
          %245 = sbr.rel (%p243) target = $region28
        $region27: #{tpu_custom_call.1} parent=11 // pred_region
          %s247 = ssub.s32 512, 512
          %248 = vsyncadd [#allocation10], %s247
          %s249 = sshll.u32 [#allocation9], 4
          %s250 = int_to_ptr.vmem [resolvable:$true] %s249
          %255 = dma.hbm_to_vmem [thread:$0]  %s4, 512, %s250, [#allocation10], 128, 128, 8
        $region28: #{tpu_custom_call.1} parent=11 // pred_fallthru
          _
        // Predicated region
        $region29: #{tpu_custom_call.1} parent=11 // pred_check
          %p256 = pneg %p152
        $region30: #{tpu_custom_call.1} parent=11 // pred_check_branch
          %258 = sbr.rel (%p256) target = $region32
        $region31: #{tpu_custom_call.1} parent=11 // pred_region
          %s260 = ssub.s32 256, 256
          %261 = vsyncadd [#allocation10], %s260
          %s262 = sshll.u32 [#allocation11], 4
          %s263 = int_to_ptr.vmem [resolvable:$true] %s262
          %268 = dma.hbm_to_vmem [thread:$0]  %s5, 256, %s263, [#allocation10], 128, 128, 8
        $region32: #{tpu_custom_call.1} parent=11 // pred_fallthru
          _
        // Predicated region
        $region33: #{tpu_custom_call.1} parent=11 // pred_check
          %p269 = pneg %p173
        $region34: #{tpu_custom_call.1} parent=11 // pred_check_branch
          %271 = sbr.rel (%p269) target = $region36
        $region35: #{tpu_custom_call.1} parent=11 // pred_region
          _
        $region36: #{tpu_custom_call.1} parent=11 // pred_fallthru
          _
      $region12: #{tpu_custom_call.1} parent=5 // pred_fallthru
        _
      %p272 = scmp.lt.s32.totalorder %s21, 2
      // Predicated region
      $region37: #{tpu_custom_call.1} parent=5 // pred_check
        %p273 = pneg %p272
      $region38: #{tpu_custom_call.1} parent=5 // pred_check_branch
        %275 = sbr.rel (%p273) target = $region40
      $region39: #{tpu_custom_call.1} parent=5 // pred_region
        // Predicated region
        $region41: #{tpu_custom_call.1} parent=39 // pred_check
          %p276 = pneg %p41
        $region42: #{tpu_custom_call.1} parent=39 // pred_check_branch
          %278 = sbr.rel (%p276) target = $region44
        $region43: #{tpu_custom_call.1} parent=39 // pred_region
          %s279 = sand.u32 %s31, 1
          %s280 = scalar_lea.sflag [#allocation4], %s279
          %s281 = sand.u32 %s31, 1
          %s282 = smul.addr %s281, 16
          %s283 = scalar_lea.vmem [#allocation3], %s282
          %s285 = ssub.s32 256, 256
          %286 = vsyncadd %s280, %s285
          %s287 = smul.addr %s21, 2
          %s288 = smul.addr %s287, 128
          %s289 = scalar_lea.hbm %s0, %s288
          %s290 = sshll.u32 %s283, 4
          %s291 = int_to_ptr.vmem [resolvable:$true] %s290
          %296 = dma.hbm_to_vmem [thread:$0]  %s289, 256, %s291, %s280, 128, 128, 8
        $region44: #{tpu_custom_call.1} parent=39 // pred_fallthru
          _
      $region40: #{tpu_custom_call.1} parent=5 // pred_fallthru
        _
      %p297 = scmp.le.s32.totalorder 1, %s21
      %p298 = scmp.lt.s32.totalorder %s21, 3
      %p299 = pnand %p297, %p298
      %p300 = pneg %p299
      // Predicated region
      $region45: #{tpu_custom_call.1} parent=5 // pred_check
        _
      $region46: #{tpu_custom_call.1} parent=5 // pred_check_branch
        %302 = sbr.rel (%p299) target = $region48
      $region47: #{tpu_custom_call.1} parent=5 // pred_region
        %s303 = ssub.s32 %s21, 1
        %s304 = sand.u32 %s34, 1
        %s305 = scalar_lea.sflag [#allocation4], %s304
        %s306 = sand.u32 %s34, 1
        %s307 = smul.addr %s306, 16
        %s308 = scalar_lea.vmem [#allocation3], %s307
        // Predicated region
        $region49: #{tpu_custom_call.1} parent=47 // pred_check
          %p309 = pneg %p47
        $region50: #{tpu_custom_call.1} parent=47 // pred_check_branch
          %311 = sbr.rel (%p309) target = $region52
        $region51: #{tpu_custom_call.1} parent=47 // pred_region
          %312 = dma.done %s305, 256
        $region52: #{tpu_custom_call.1} parent=47 // pred_fallthru
          _
        // Predicated region
        $region53: #{tpu_custom_call.1} parent=47 // pred_check
          %p313 = pneg %p68
        $region54: #{tpu_custom_call.1} parent=47 // pred_check_branch
          %315 = sbr.rel (%p313) target = $region56
        $region55: #{tpu_custom_call.1} parent=47 // pred_region
          %316 = dma.done [#allocation7], 512
        $region56: #{tpu_custom_call.1} parent=47 // pred_fallthru
          _
        // Predicated region
        $region57: #{tpu_custom_call.1} parent=47 // pred_check
          %p317 = pneg %p89
        $region58: #{tpu_custom_call.1} parent=47 // pred_check_branch
          %319 = sbr.rel (%p317) target = $region60
        $region59: #{tpu_custom_call.1} parent=47 // pred_region
          %320 = dma.done [#allocation7], 256
        $region60: #{tpu_custom_call.1} parent=47 // pred_fallthru
          _
        // Predicated region
        $region61: #{tpu_custom_call.1} parent=47 // pred_check
          %p321 = pneg %p131
        $region62: #{tpu_custom_call.1} parent=47 // pred_check_branch
          %323 = sbr.rel (%p321) target = $region64
        $region63: #{tpu_custom_call.1} parent=47 // pred_region
          %324 = dma.done [#allocation10], 512
        $region64: #{tpu_custom_call.1} parent=47 // pred_fallthru
          _
        // Predicated region
        $region65: #{tpu_custom_call.1} parent=47 // pred_check
          %p325 = pneg %p152
        $region66: #{tpu_custom_call.1} parent=47 // pred_check_branch
          %327 = sbr.rel (%p325) target = $region68
        $region67: #{tpu_custom_call.1} parent=47 // pred_region
          %328 = dma.done [#allocation10], 256
        $region68: #{tpu_custom_call.1} parent=47 // pred_fallthru
          _
        %s329 = sand.u32 %s34, 1
        %s330 = scalar_lea.sflag [#allocation4], %s329
        %s331 = sand.u32 %s34, 1
        %s332 = smul.addr %s331, 16
        %s333 = scalar_lea.vmem [#allocation3], %s332
        %p334 = pneg %p47
        %p335 = pneg %p44
        %p336 = pneg %p68
        %p337 = pneg %p65
        %p338 = pneg %p89
        %p339 = pneg %p86
        %p340 = pneg %p110
        %p341 = pneg %p107
        %p342 = pneg %p131
        %p343 = pneg %p128
        %p344 = pneg %p152
        %p345 = pneg %p149
        %p346 = pneg %p173
        %p347 = pneg %p170
        %p348 = pneg %p199
        %p349 = pneg %p196
        %s350 = sand.u32 %s186, 1
        %s351 = scalar_lea.sflag [#allocation5], %s350
        %s352 = sand.u32 %s186, 1
        %s353 = smul.addr %s352, 16
        %s354 = scalar_lea.vmem [#allocation12], %s353
        %355 = vst [vmem:[#allocation2] sm:$0xff] 0.0
        %356 = vst [vmem:[#allocation2 + $0x8] sm:$0xff] 0.0
        %357 = vst [vmem:[#allocation2 + $0x10] sm:$0xf] 0.0
        %v358 = vld [vmem:[%s308] sm:$0xff]
        %v359 = vld [vmem:[%s308 + $0x8] sm:$0xff]
        %360 = vst [vmem:[#allocation2 + $0x2] sm:$0xff] %v358
        %361 = vst [vmem:[#allocation2 + $0xa] sm:$0xff] %v359
        %v362 = vld [vmem:[#allocation6] sm:$0xff]
        %v363 = vld [vmem:[#allocation6 + $0x8] sm:$0xff]
        %v364 = vld [vmem:[#allocation6 + $0x10] sm:$0xff]
        %v365 = vld [vmem:[#allocation6 + $0x18] sm:$0x1]
        %v366 = vld [vmem:[#allocation8] sm:$0xff]
        %v367 = vld [vmem:[#allocation8 + $0x8] sm:$0x7f]
        %v368 = vld [vmem:[#allocation2] sm:$0xff]
        %v369 = vld [vmem:[#allocation2 + $0x8] sm:$0xff]
        %v370 = vlaneseq
        %v371 = vshrl.u32 %v370, 7
        %v372 = vsub.s32 2, %v371
        %v373 = vrot.slane %v362, %v372
        %v374 = vmul.f32 %v368, %v373
        %v375 = vmul.f32 %v369, %v373
        %376 = vrot.lane.b32.xlu0 %v368, 16
        %v377 = vpop.permute.xlu0 %376
        %378 = vrot.lane.b32.xlu0 %v369, 16
        %v379 = vpop.permute.xlu0 %378
        %v380 = vlaneseq
        %v381 = vshrl.u32 %v380, 7
        %v382 = vsub.s32 0, %v381
        %v383 = vrot.slane %v362, %v382
        %v384 = vmul.f32 %v377, %v383
        %v385 = vmul.f32 %v379, %v383
        %v386 = vadd.f32 %v374, %v384
        %v387 = vadd.f32 %v375, %v385
        %388 = vrot.lane.b32.xlu0 %v368, 8
        %v389 = vpop.permute.xlu0 %388
        %390 = vrot.lane.b32.xlu0 %v369, 8
        %v391 = vpop.permute.xlu0 %390
        %v392 = vlaneseq
        %v393 = vshrl.u32 %v392, 7
        %v394 = vsub.s32 1, %v393
        %v395 = vrot.slane %v362, %v394
        %v396 = vmul.f32 %v389, %v395
        %v397 = vmul.f32 %v391, %v395
        %v398 = vadd.f32 %v386, %v396
        %v399 = vadd.f32 %v387, %v397
        %400 = vrot.lane.b32.xlu0 %v368, 120
        %v401 = vpop.permute.xlu0 %400
        %402 = vrot.lane.b32.xlu0 %v369, 120
        %v403 = vpop.permute.xlu0 %402
        %v404 = vlaneseq
        %v405 = vshrl.u32 %v404, 7
        %v406 = vsub.s32 3, %v405
        %v407 = vrot.slane %v362, %v406
        %v408 = vmul.f32 %v401, %v407
        %v409 = vmul.f32 %v403, %v407
        %v410 = vadd.f32 %v398, %v408
        %v411 = vadd.f32 %v399, %v409
        %412 = vrot.lane.b32.xlu0 %v368, 112
        %v413 = vpop.permute.xlu0 %412
        %414 = vrot.lane.b32.xlu0 %v369, 112
        %v415 = vpop.permute.xlu0 %414
        %v416 = vlaneseq
        %v417 = vshrl.u32 %v416, 7
        %v418 = vsub.s32 4, %v417
        %v419 = vrot.slane %v362, %v418
        %v420 = vmul.f32 %v413, %v419
        %v421 = vmul.f32 %v415, %v419
        %v422 = vadd.f32 %v410, %v420
        %v423 = vadd.f32 %v411, %v421
        %v424 = vld [vmem:[#allocation2 + $0x1] sm:$0xff]
        %v425 = vld [vmem:[#allocation2 + $0x9] sm:$0xff]
        %v426 = vlaneseq
        %v427 = vshrl.u32 %v426, 7
        %v428 = vsub.s32 7, %v427
        %v429 = vrot.slane %v362, %v428
        %v430 = vmul.f32 %v424, %v429
        %v431 = vmul.f32 %v425, %v429
        %432 = vrot.lane.b32.xlu0 %v424, 16
        %v433 = vpop.permute.xlu0 %432
        %434 = vrot.lane.b32.xlu0 %v425, 16
        %v435 = vpop.permute.xlu0 %434
        %v436 = vlaneseq
        %v437 = vshrl.u32 %v436, 7
        %v438 = vsub.s32 5, %v437
        %v439 = vrot.slane %v362, %v438
        %v440 = vmul.f32 %v433, %v439
        %v441 = vmul.f32 %v435, %v439
        %v442 = vadd.f32 %v430, %v440
        %v443 = vadd.f32 %v431, %v441
        %444 = vrot.lane.b32.xlu0 %v424, 8
        %v445 = vpop.permute.xlu0 %444
        %446 = vrot.lane.b32.xlu0 %v425, 8
        %v447 = vpop.permute.xlu0 %446
        %v448 = vlaneseq
        %v449 = vshrl.u32 %v448, 7
        %v450 = vsub.s32 6, %v449
        %v451 = vrot.slane %v362, %v450
        %v452 = vmul.f32 %v445, %v451
        %v453 = vmul.f32 %v447, %v451
        %v454 = vadd.f32 %v442, %v452
        %v455 = vadd.f32 %v443, %v453
        %456 = vrot.lane.b32.xlu0 %v424, 120
        %v457 = vpop.permute.xlu0 %456
        %458 = vrot.lane.b32.xlu0 %v425, 120
        %v459 = vpop.permute.xlu0 %458
        %v460 = vlaneseq
        %v461 = vshrl.u32 %v460, 7
        %v462 = vsub.s32 0, %v461
        %v463 = vrot.slane %v363, %v462
        %v464 = vmul.f32 %v457, %v463
        %v465 = vmul.f32 %v459, %v463
        %v466 = vadd.f32 %v454, %v464
        %v467 = vadd.f32 %v455, %v465
        %468 = vrot.lane.b32.xlu0 %v424, 112
        %v469 = vpop.permute.xlu0 %468
        %470 = vrot.lane.b32.xlu0 %v425, 112
        %v471 = vpop.permute.xlu0 %470
        %v472 = vlaneseq
        %v473 = vshrl.u32 %v472, 7
        %v474 = vsub.s32 1, %v473
        %v475 = vrot.slane %v363, %v474
        %v476 = vmul.f32 %v469, %v475
        %v477 = vmul.f32 %v471, %v475
        %v478 = vadd.f32 %v466, %v476
        %v479 = vadd.f32 %v467, %v477
        %v480 = vadd.f32 %v422, %v478
        %v481 = vadd.f32 %v423, %v479
        %v482 = vld [vmem:[#allocation2 + $0x2] sm:$0xff]
        %v483 = vld [vmem:[#allocation2 + $0xa] sm:$0xff]
        %v484 = vlaneseq
        %v485 = vshrl.u32 %v484, 7
        %v486 = vsub.s32 4, %v485
        %v487 = vrot.slane %v363, %v486
        %v488 = vmul.f32 %v482, %v487
        %v489 = vmul.f32 %v483, %v487
        %490 = vrot.lane.b32.xlu0 %v482, 16
        %v491 = vpop.permute.xlu0 %490
        %492 = vrot.lane.b32.xlu0 %v483, 16
        %v493 = vpop.permute.xlu0 %492
        %v494 = vlaneseq
        %v495 = vshrl.u32 %v494, 7
        %v496 = vsub.s32 2, %v495
        %v497 = vrot.slane %v363, %v496
        %v498 = vmul.f32 %v491, %v497
        %v499 = vmul.f32 %v493, %v497
        %v500 = vadd.f32 %v488, %v498
        %v501 = vadd.f32 %v489, %v499
        %502 = vrot.lane.b32.xlu0 %v482, 8
        %v503 = vpop.permute.xlu0 %502
        %504 = vrot.lane.b32.xlu0 %v483, 8
        %v505 = vpop.permute.xlu0 %504
        %v506 = vlaneseq
        %v507 = vshrl.u32 %v506, 7
        %v508 = vsub.s32 3, %v507
        %v509 = vrot.slane %v363, %v508
        %v510 = vmul.f32 %v503, %v509
        %v511 = vmul.f32 %v505, %v509
        %v512 = vadd.f32 %v500, %v510
        %v513 = vadd.f32 %v501, %v511
        %514 = vrot.lane.b32.xlu0 %v482, 120
        %v515 = vpop.permute.xlu0 %514
        %516 = vrot.lane.b32.xlu0 %v483, 120
        %v517 = vpop.permute.xlu0 %516
        %v518 = vlaneseq
        %v519 = vshrl.u32 %v518, 7
        %v520 = vsub.s32 5, %v519
        %v521 = vrot.slane %v363, %v520
        %v522 = vmul.f32 %v515, %v521
        %v523 = vmul.f32 %v517, %v521
        %v524 = vadd.f32 %v512, %v522
        %v525 = vadd.f32 %v513, %v523
        %526 = vrot.lane.b32.xlu0 %v482, 112
        %v527 = vpop.permute.xlu0 %526
        %528 = vrot.lane.b32.xlu0 %v483, 112
        %v529 = vpop.permute.xlu0 %528
        %v530 = vlaneseq
        %v531 = vshrl.u32 %v530, 7
        %v532 = vsub.s32 6, %v531
        %v533 = vrot.slane %v363, %v532
        %v534 = vmul.f32 %v527, %v533
        %v535 = vmul.f32 %v529, %v533
        %v536 = vadd.f32 %v524, %v534
        %v537 = vadd.f32 %v525, %v535
        %v538 = vadd.f32 %v480, %v536
        %v539 = vadd.f32 %v481, %v537
        %v540 = vld [vmem:[#allocation2 + $0x3] sm:$0xff]
        %v541 = vld [vmem:[#allocation2 + $0xb] sm:$0xff]
        %v542 = vlaneseq
        %v543 = vshrl.u32 %v542, 7
        %v544 = vsub.s32 1, %v543
        %v545 = vrot.slane %v364, %v544
        %v546 = vmul.f32 %v540, %v545
        %v547 = vmul.f32 %v541, %v545
        %548 = vrot.lane.b32.xlu0 %v540, 16
        %v549 = vpop.permute.xlu0 %548
        %550 = vrot.lane.b32.xlu0 %v541, 16
        %v551 = vpop.permute.xlu0 %550
        %v552 = vlaneseq
        %v553 = vshrl.u32 %v552, 7
        %v554 = vsub.s32 7, %v553
        %v555 = vrot.slane %v363, %v554
        %v556 = vmul.f32 %v549, %v555
        %v557 = vmul.f32 %v551, %v555
        %v558 = vadd.f32 %v546, %v556
        %v559 = vadd.f32 %v547, %v557
        %560 = vrot.lane.b32.xlu0 %v540, 8
        %v561 = vpop.permute.xlu0 %560
        %562 = vrot.lane.b32.xlu0 %v541, 8
        %v563 = vpop.permute.xlu0 %562
        %v564 = vlaneseq
        %v565 = vshrl.u32 %v564, 7
        %v566 = vsub.s32 0, %v565
        %v567 = vrot.slane %v364, %v566
        %v568 = vmul.f32 %v561, %v567
        %v569 = vmul.f32 %v563, %v567
        %v570 = vadd.f32 %v558, %v568
        %v571 = vadd.f32 %v559, %v569
        %572 = vrot.lane.b32.xlu0 %v540, 120
        %v573 = vpop.permute.xlu0 %572
        %574 = vrot.lane.b32.xlu0 %v541, 120
        %v575 = vpop.permute.xlu0 %574
        %v576 = vlaneseq
        %v577 = vshrl.u32 %v576, 7
        %v578 = vsub.s32 2, %v577
        %v579 = vrot.slane %v364, %v578
        %v580 = vmul.f32 %v573, %v579
        %v581 = vmul.f32 %v575, %v579
        %v582 = vadd.f32 %v570, %v580
        %v583 = vadd.f32 %v571, %v581
        %584 = vrot.lane.b32.xlu0 %v540, 112
        %v585 = vpop.permute.xlu0 %584
        %586 = vrot.lane.b32.xlu0 %v541, 112
        %v587 = vpop.permute.xlu0 %586
        %v588 = vlaneseq
        %v589 = vshrl.u32 %v588, 7
        %v590 = vsub.s32 3, %v589
        %v591 = vrot.slane %v364, %v590
        %v592 = vmul.f32 %v585, %v591
        %v593 = vmul.f32 %v587, %v591
        %v594 = vadd.f32 %v582, %v592
        %v595 = vadd.f32 %v583, %v593
        %v596 = vadd.f32 %v538, %v594
        %v597 = vadd.f32 %v539, %v595
        %v598 = vld [vmem:[#allocation2 + $0x4] sm:$0xff]
        %v599 = vld [vmem:[#allocation2 + $0xc] sm:$0xff]
        %v600 = vlaneseq
        %v601 = vshrl.u32 %v600, 7
        %v602 = vsub.s32 6, %v601
        %v603 = vrot.slane %v364, %v602
        %v604 = vmul.f32 %v598, %v603
        %v605 = vmul.f32 %v599, %v603
        %606 = vrot.lane.b32.xlu0 %v598, 16
        %v607 = vpop.permute.xlu0 %606
        %608 = vrot.lane.b32.xlu0 %v599, 16
        %v609 = vpop.permute.xlu0 %608
        %v610 = vlaneseq
        %v611 = vshrl.u32 %v610, 7
        %v612 = vsub.s32 4, %v611
        %v613 = vrot.slane %v364, %v612
        %v614 = vmul.f32 %v607, %v613
        %v615 = vmul.f32 %v609, %v613
        %v616 = vadd.f32 %v604, %v614
        %v617 = vadd.f32 %v605, %v615
        %618 = vrot.lane.b32.xlu0 %v598, 8
        %v619 = vpop.permute.xlu0 %618
        %620 = vrot.lane.b32.xlu0 %v599, 8
        %v621 = vpop.permute.xlu0 %620
        %v622 = vlaneseq
        %v623 = vshrl.u32 %v622, 7
        %v624 = vsub.s32 5, %v623
        %v625 = vrot.slane %v364, %v624
        %v626 = vmul.f32 %v619, %v625
        %v627 = vmul.f32 %v621, %v625
        %v628 = vadd.f32 %v616, %v626
        %v629 = vadd.f32 %v617, %v627
        %630 = vrot.lane.b32.xlu0 %v598, 120
        %v631 = vpop.permute.xlu0 %630
        %632 = vrot.lane.b32.xlu0 %v599, 120
        %v633 = vpop.permute.xlu0 %632
        %v634 = vlaneseq
        %v635 = vshrl.u32 %v634, 7
        %v636 = vsub.s32 7, %v635
        %v637 = vrot.slane %v364, %v636
        %v638 = vmul.f32 %v631, %v637
        %v639 = vmul.f32 %v633, %v637
        %v640 = vadd.f32 %v628, %v638
        %v641 = vadd.f32 %v629, %v639
        %642 = vrot.lane.b32.xlu0 %v598, 112
        %v643 = vpop.permute.xlu0 %642
        %644 = vrot.lane.b32.xlu0 %v599, 112
        %v645 = vpop.permute.xlu0 %644
        %v646 = vlaneseq
        %v647 = vshrl.u32 %v646, 7
        %v648 = vsub.s32 0, %v647
        %v649 = vrot.slane %v365, %v648
        %v650 = vmul.f32 %v643, %v649
        %v651 = vmul.f32 %v645, %v649
        %v652 = vadd.f32 %v640, %v650
        %v653 = vadd.f32 %v641, %v651
        %v654 = vadd.f32 %v596, %v652
        %v655 = vadd.f32 %v597, %v653
        %v656 = vlaneseq
        %v657 = vshrl.u32 %v656, 7
        %v658 = vsub.s32 7, %v657
        %v659 = vrot.slane %v366, %v658
        %v660 = vmul.f32 %v654, %v659
        %v661 = vmul.f32 %v655, %v659
        %662 = vrot.lane.b32.xlu0 %v654, 121
        %v663 = vpop.permute.xlu0 %662
        %664 = vrot.lane.b32.xlu0 %v655, 121
        %v665 = vpop.permute.xlu0 %664
        %v666 = vlaneseq
        %v667 = vshrl.u32 %v666, 7
        %v668 = vsub.s32 0, %v667
        %v669 = vrot.slane %v366, %v668
        %v670 = vmul.f32 %v663, %v669
        %v671 = vmul.f32 %v665, %v669
        %v672 = vadd.f32 %v660, %v670
        %v673 = vadd.f32 %v661, %v671
        %674 = vrot.lane.b32.xlu0 %v654, 122
        %v675 = vpop.permute.xlu0 %674
        %676 = vrot.lane.b32.xlu0 %v655, 122
        %v677 = vpop.permute.xlu0 %676
        %v678 = vlaneseq
        %v679 = vshrl.u32 %v678, 7
        %v680 = vsub.s32 1, %v679
        %v681 = vrot.slane %v366, %v680
        %v682 = vmul.f32 %v675, %v681
        %v683 = vmul.f32 %v677, %v681
        %v684 = vadd.f32 %v672, %v682
        %v685 = vadd.f32 %v673, %v683
        %686 = vrot.lane.b32.xlu0 %v654, 123
        %v687 = vpop.permute.xlu0 %686
        %688 = vrot.lane.b32.xlu0 %v655, 123
        %v689 = vpop.permute.xlu0 %688
        %v690 = vlaneseq
        %v691 = vshrl.u32 %v690, 7
        %v692 = vsub.s32 2, %v691
        %v693 = vrot.slane %v366, %v692
        %v694 = vmul.f32 %v687, %v693
        %v695 = vmul.f32 %v689, %v693
        %v696 = vadd.f32 %v684, %v694
        %v697 = vadd.f32 %v685, %v695
        %698 = vrot.lane.b32.xlu0 %v654, 124
        %v699 = vpop.permute.xlu0 %698
        %700 = vrot.lane.b32.xlu0 %v655, 124
        %v701 = vpop.permute.xlu0 %700
        %v702 = vlaneseq
        %v703 = vshrl.u32 %v702, 7
        %v704 = vsub.s32 3, %v703
        %v705 = vrot.slane %v366, %v704
        %v706 = vmul.f32 %v699, %v705
        %v707 = vmul.f32 %v701, %v705
        %v708 = vadd.f32 %v696, %v706
        %v709 = vadd.f32 %v697, %v707
        %710 = vrot.lane.b32.xlu0 %v654, 125
        %v711 = vpop.permute.xlu0 %710
        %712 = vrot.lane.b32.xlu0 %v655, 125
        %v713 = vpop.permute.xlu0 %712
        %v714 = vlaneseq
        %v715 = vshrl.u32 %v714, 7
        %v716 = vsub.s32 4, %v715
        %v717 = vrot.slane %v366, %v716
        %v718 = vmul.f32 %v711, %v717
        %v719 = vmul.f32 %v713, %v717
        %v720 = vadd.f32 %v708, %v718
        %v721 = vadd.f32 %v709, %v719
        %722 = vrot.lane.b32.xlu0 %v654, 126
        %v723 = vpop.permute.xlu0 %722
        %724 = vrot.lane.b32.xlu0 %v655, 126
        %v725 = vpop.permute.xlu0 %724
        %v726 = vlaneseq
        %v727 = vshrl.u32 %v726, 7
        %v728 = vsub.s32 5, %v727
        %v729 = vrot.slane %v366, %v728
        %v730 = vmul.f32 %v723, %v729
        %v731 = vmul.f32 %v725, %v729
        %v732 = vadd.f32 %v720, %v730
        %v733 = vadd.f32 %v721, %v731
        %734 = vrot.lane.b32.xlu0 %v654, 127
        %v735 = vpop.permute.xlu0 %734
        %736 = vrot.lane.b32.xlu0 %v655, 127
        %v737 = vpop.permute.xlu0 %736
        %v738 = vlaneseq
        %v739 = vshrl.u32 %v738, 7
        %v740 = vsub.s32 6, %v739
        %v741 = vrot.slane %v366, %v740
        %v742 = vmul.f32 %v735, %v741
        %v743 = vmul.f32 %v737, %v741
        %v744 = vadd.f32 %v732, %v742
        %v745 = vadd.f32 %v733, %v743
        %746 = vrot.lane.b32.xlu0 %v654, 1
        %v747 = vpop.permute.xlu0 %746
        %748 = vrot.lane.b32.xlu0 %v655, 1
        %v749 = vpop.permute.xlu0 %748
        %v750 = vlaneseq
        %v751 = vshrl.u32 %v750, 7
        %v752 = vsub.s32 0, %v751
        %v753 = vrot.slane %v367, %v752
        %v754 = vmul.f32 %v747, %v753
        %v755 = vmul.f32 %v749, %v753
        %v756 = vadd.f32 %v744, %v754
        %v757 = vadd.f32 %v745, %v755
        %758 = vrot.lane.b32.xlu0 %v654, 2
        %v759 = vpop.permute.xlu0 %758
        %760 = vrot.lane.b32.xlu0 %v655, 2
        %v761 = vpop.permute.xlu0 %760
        %v762 = vlaneseq
        %v763 = vshrl.u32 %v762, 7
        %v764 = vsub.s32 1, %v763
        %v765 = vrot.slane %v367, %v764
        %v766 = vmul.f32 %v759, %v765
        %v767 = vmul.f32 %v761, %v765
        %v768 = vadd.f32 %v756, %v766
        %v769 = vadd.f32 %v757, %v767
        %770 = vrot.lane.b32.xlu0 %v654, 3
        %v771 = vpop.permute.xlu0 %770
        %772 = vrot.lane.b32.xlu0 %v655, 3
        %v773 = vpop.permute.xlu0 %772
        %v774 = vlaneseq
        %v775 = vshrl.u32 %v774, 7
        %v776 = vsub.s32 2, %v775
        %v777 = vrot.slane %v367, %v776
        %v778 = vmul.f32 %v771, %v777
        %v779 = vmul.f32 %v773, %v777
        %v780 = vadd.f32 %v768, %v778
        %v781 = vadd.f32 %v769, %v779
        %782 = vrot.lane.b32.xlu0 %v654, 4
        %v783 = vpop.permute.xlu0 %782
        %784 = vrot.lane.b32.xlu0 %v655, 4
        %v785 = vpop.permute.xlu0 %784
        %v786 = vlaneseq
        %v787 = vshrl.u32 %v786, 7
        %v788 = vsub.s32 3, %v787
        %v789 = vrot.slane %v367, %v788
        %v790 = vmul.f32 %v783, %v789
        %v791 = vmul.f32 %v785, %v789
        %v792 = vadd.f32 %v780, %v790
        %v793 = vadd.f32 %v781, %v791
        %794 = vrot.lane.b32.xlu0 %v654, 5
        %v795 = vpop.permute.xlu0 %794
        %796 = vrot.lane.b32.xlu0 %v655, 5
        %v797 = vpop.permute.xlu0 %796
        %v798 = vlaneseq
        %v799 = vshrl.u32 %v798, 7
        %v800 = vsub.s32 4, %v799
        %v801 = vrot.slane %v367, %v800
        %v802 = vmul.f32 %v795, %v801
        %v803 = vmul.f32 %v797, %v801
        %v804 = vadd.f32 %v792, %v802
        %v805 = vadd.f32 %v793, %v803
        %806 = vrot.lane.b32.xlu0 %v654, 6
        %v807 = vpop.permute.xlu0 %806
        %808 = vrot.lane.b32.xlu0 %v655, 6
        %v809 = vpop.permute.xlu0 %808
        %v810 = vlaneseq
        %v811 = vshrl.u32 %v810, 7
        %v812 = vsub.s32 5, %v811
        %v813 = vrot.slane %v367, %v812
        %v814 = vmul.f32 %v807, %v813
        %v815 = vmul.f32 %v809, %v813
        %v816 = vadd.f32 %v804, %v814
        %v817 = vadd.f32 %v805, %v815
        %818 = vrot.lane.b32.xlu0 %v654, 7
        %v819 = vpop.permute.xlu0 %818
        %820 = vrot.lane.b32.xlu0 %v655, 7
        %v821 = vpop.permute.xlu0 %820
        %v822 = vlaneseq
        %v823 = vshrl.u32 %v822, 7
        %v824 = vsub.s32 6, %v823
        %v825 = vrot.slane %v367, %v824
        %v826 = vmul.f32 %v819, %v825
        %v827 = vmul.f32 %v821, %v825
        %v828 = vadd.f32 %v816, %v826
        %v829 = vadd.f32 %v817, %v827
        %v830 = vld [vmem:[%s3] sm:$0x1]
        %v832 = vlaneseq
        %v833 = vshrl.u32 %v832, 7
        %v834 = vsub.s32 0, %v833
        %v835 = vrot.slane %v830, %v834
        %v837 = vadd.f32 %v828, %v835
        %v838 = vadd.f32 %v829, %v835
        %v839 = vadd.f32 %v837, %v358
        %v840 = vadd.f32 %v838, %v359
        %v841 = vmax.f32 %v839, 0.0
        %v842 = vmax.f32 %v840, 0.0
        %843 = vst [vmem:[#allocation2 + $0x2] sm:$0xff] %v841
        %844 = vst [vmem:[#allocation2 + $0xa] sm:$0xff] %v842
        %v845 = vld [vmem:[#allocation9] sm:$0xff]
        %v846 = vld [vmem:[#allocation9 + $0x8] sm:$0xff]
        %v847 = vld [vmem:[#allocation9 + $0x10] sm:$0xff]
        %v848 = vld [vmem:[#allocation9 + $0x18] sm:$0x1]
        %v849 = vld [vmem:[#allocation11] sm:$0xff]
        %v850 = vld [vmem:[#allocation11 + $0x8] sm:$0x7f]
        %v851 = vld [vmem:[#allocation2] sm:$0xff]
        %v852 = vld [vmem:[#allocation2 + $0x8] sm:$0xff]
        %v853 = vlaneseq
        %v854 = vshrl.u32 %v853, 7
        %v855 = vsub.s32 2, %v854
        %v856 = vrot.slane %v845, %v855
        %v857 = vmul.f32 %v851, %v856
        %v858 = vmul.f32 %v852, %v856
        %859 = vrot.lane.b32.xlu0 %v851, 16
        %v860 = vpop.permute.xlu0 %859
        %861 = vrot.lane.b32.xlu0 %v852, 16
        %v862 = vpop.permute.xlu0 %861
        %v863 = vlaneseq
        %v864 = vshrl.u32 %v863, 7
        %v865 = vsub.s32 0, %v864
        %v866 = vrot.slane %v845, %v865
        %v867 = vmul.f32 %v860, %v866
        %v868 = vmul.f32 %v862, %v866
        %v869 = vadd.f32 %v857, %v867
        %v870 = vadd.f32 %v858, %v868
        %871 = vrot.lane.b32.xlu0 %v851, 8
        %v872 = vpop.permute.xlu0 %871
        %873 = vrot.lane.b32.xlu0 %v852, 8
        %v874 = vpop.permute.xlu0 %873
        %v875 = vlaneseq
        %v876 = vshrl.u32 %v875, 7
        %v877 = vsub.s32 1, %v876
        %v878 = vrot.slane %v845, %v877
        %v879 = vmul.f32 %v872, %v878
        %v880 = vmul.f32 %v874, %v878
        %v881 = vadd.f32 %v869, %v879
        %v882 = vadd.f32 %v870, %v880
        %883 = vrot.lane.b32.xlu0 %v851, 120
        %v884 = vpop.permute.xlu0 %883
        %885 = vrot.lane.b32.xlu0 %v852, 120
        %v886 = vpop.permute.xlu0 %885
        %v887 = vlaneseq
        %v888 = vshrl.u32 %v887, 7
        %v889 = vsub.s32 3, %v888
        %v890 = vrot.slane %v845, %v889
        %v891 = vmul.f32 %v884, %v890
        %v892 = vmul.f32 %v886, %v890
        %v893 = vadd.f32 %v881, %v891
        %v894 = vadd.f32 %v882, %v892
        %895 = vrot.lane.b32.xlu0 %v851, 112
        %v896 = vpop.permute.xlu0 %895
        %897 = vrot.lane.b32.xlu0 %v852, 112
        %v898 = vpop.permute.xlu0 %897
        %v899 = vlaneseq
        %v900 = vshrl.u32 %v899, 7
        %v901 = vsub.s32 4, %v900
        %v902 = vrot.slane %v845, %v901
        %v903 = vmul.f32 %v896, %v902
        %v904 = vmul.f32 %v898, %v902
        %v905 = vadd.f32 %v893, %v903
        %v906 = vadd.f32 %v894, %v904
        %v907 = vld [vmem:[#allocation2 + $0x1] sm:$0xff]
        %v908 = vld [vmem:[#allocation2 + $0x9] sm:$0xff]
        %v909 = vlaneseq
        %v910 = vshrl.u32 %v909, 7
        %v911 = vsub.s32 7, %v910
        %v912 = vrot.slane %v845, %v911
        %v913 = vmul.f32 %v907, %v912
        %v914 = vmul.f32 %v908, %v912
        %915 = vrot.lane.b32.xlu0 %v907, 16
        %v916 = vpop.permute.xlu0 %915
        %917 = vrot.lane.b32.xlu0 %v908, 16
        %v918 = vpop.permute.xlu0 %917
        %v919 = vlaneseq
        %v920 = vshrl.u32 %v919, 7
        %v921 = vsub.s32 5, %v920
        %v922 = vrot.slane %v845, %v921
        %v923 = vmul.f32 %v916, %v922
        %v924 = vmul.f32 %v918, %v922
        %v925 = vadd.f32 %v913, %v923
        %v926 = vadd.f32 %v914, %v924
        %927 = vrot.lane.b32.xlu0 %v907, 8
        %v928 = vpop.permute.xlu0 %927
        %929 = vrot.lane.b32.xlu0 %v908, 8
        %v930 = vpop.permute.xlu0 %929
        %v931 = vlaneseq
        %v932 = vshrl.u32 %v931, 7
        %v933 = vsub.s32 6, %v932
        %v934 = vrot.slane %v845, %v933
        %v935 = vmul.f32 %v928, %v934
        %v936 = vmul.f32 %v930, %v934
        %v937 = vadd.f32 %v925, %v935
        %v938 = vadd.f32 %v926, %v936
        %939 = vrot.lane.b32.xlu0 %v907, 120
        %v940 = vpop.permute.xlu0 %939
        %941 = vrot.lane.b32.xlu0 %v908, 120
        %v942 = vpop.permute.xlu0 %941
        %v943 = vlaneseq
        %v944 = vshrl.u32 %v943, 7
        %v945 = vsub.s32 0, %v944
        %v946 = vrot.slane %v846, %v945
        %v947 = vmul.f32 %v940, %v946
        %v948 = vmul.f32 %v942, %v946
        %v949 = vadd.f32 %v937, %v947
        %v950 = vadd.f32 %v938, %v948
        %951 = vrot.lane.b32.xlu0 %v907, 112
        %v952 = vpop.permute.xlu0 %951
        %953 = vrot.lane.b32.xlu0 %v908, 112
        %v954 = vpop.permute.xlu0 %953
        %v955 = vlaneseq
        %v956 = vshrl.u32 %v955, 7
        %v957 = vsub.s32 1, %v956
        %v958 = vrot.slane %v846, %v957
        %v959 = vmul.f32 %v952, %v958
        %v960 = vmul.f32 %v954, %v958
        %v961 = vadd.f32 %v949, %v959
        %v962 = vadd.f32 %v950, %v960
        %v963 = vadd.f32 %v905, %v961
        %v964 = vadd.f32 %v906, %v962
        %v965 = vld [vmem:[#allocation2 + $0x2] sm:$0xff]
        %v966 = vld [vmem:[#allocation2 + $0xa] sm:$0xff]
        %v967 = vlaneseq
        %v968 = vshrl.u32 %v967, 7
        %v969 = vsub.s32 4, %v968
        %v970 = vrot.slane %v846, %v969
        %v971 = vmul.f32 %v965, %v970
        %v972 = vmul.f32 %v966, %v970
        %973 = vrot.lane.b32.xlu0 %v965, 16
        %v974 = vpop.permute.xlu0 %973
        %975 = vrot.lane.b32.xlu0 %v966, 16
        %v976 = vpop.permute.xlu0 %975
        %v977 = vlaneseq
        %v978 = vshrl.u32 %v977, 7
        %v979 = vsub.s32 2, %v978
        %v980 = vrot.slane %v846, %v979
        %v981 = vmul.f32 %v974, %v980
        %v982 = vmul.f32 %v976, %v980
        %v983 = vadd.f32 %v971, %v981
        %v984 = vadd.f32 %v972, %v982
        %985 = vrot.lane.b32.xlu0 %v965, 8
        %v986 = vpop.permute.xlu0 %985
        %987 = vrot.lane.b32.xlu0 %v966, 8
        %v988 = vpop.permute.xlu0 %987
        %v989 = vlaneseq
        %v990 = vshrl.u32 %v989, 7
        %v991 = vsub.s32 3, %v990
        %v992 = vrot.slane %v846, %v991
        %v993 = vmul.f32 %v986, %v992
        %v994 = vmul.f32 %v988, %v992
        %v995 = vadd.f32 %v983, %v993
        %v996 = vadd.f32 %v984, %v994
        %997 = vrot.lane.b32.xlu0 %v965, 120
        %v998 = vpop.permute.xlu0 %997
        %999 = vrot.lane.b32.xlu0 %v966, 120
        %v1000 = vpop.permute.xlu0 %999
        %v1001 = vlaneseq
        %v1002 = vshrl.u32 %v1001, 7
        %v1003 = vsub.s32 5, %v1002
        %v1004 = vrot.slane %v846, %v1003
        %v1005 = vmul.f32 %v998, %v1004
        %v1006 = vmul.f32 %v1000, %v1004
        %v1007 = vadd.f32 %v995, %v1005
        %v1008 = vadd.f32 %v996, %v1006
        %1009 = vrot.lane.b32.xlu0 %v965, 112
        %v1010 = vpop.permute.xlu0 %1009
        %1011 = vrot.lane.b32.xlu0 %v966, 112
        %v1012 = vpop.permute.xlu0 %1011
        %v1013 = vlaneseq
        %v1014 = vshrl.u32 %v1013, 7
        %v1015 = vsub.s32 6, %v1014
        %v1016 = vrot.slane %v846, %v1015
        %v1017 = vmul.f32 %v1010, %v1016
        %v1018 = vmul.f32 %v1012, %v1016
        %v1019 = vadd.f32 %v1007, %v1017
        %v1020 = vadd.f32 %v1008, %v1018
        %v1021 = vadd.f32 %v963, %v1019
        %v1022 = vadd.f32 %v964, %v1020
        %v1023 = vld [vmem:[#allocation2 + $0x3] sm:$0xff]
        %v1024 = vld [vmem:[#allocation2 + $0xb] sm:$0xff]
        %v1025 = vlaneseq
        %v1026 = vshrl.u32 %v1025, 7
        %v1027 = vsub.s32 1, %v1026
        %v1028 = vrot.slane %v847, %v1027
        %v1029 = vmul.f32 %v1023, %v1028
        %v1030 = vmul.f32 %v1024, %v1028
        %1031 = vrot.lane.b32.xlu0 %v1023, 16
        %v1032 = vpop.permute.xlu0 %1031
        %1033 = vrot.lane.b32.xlu0 %v1024, 16
        %v1034 = vpop.permute.xlu0 %1033
        %v1035 = vlaneseq
        %v1036 = vshrl.u32 %v1035, 7
        %v1037 = vsub.s32 7, %v1036
        %v1038 = vrot.slane %v846, %v1037
        %v1039 = vmul.f32 %v1032, %v1038
        %v1040 = vmul.f32 %v1034, %v1038
        %v1041 = vadd.f32 %v1029, %v1039
        %v1042 = vadd.f32 %v1030, %v1040
        %1043 = vrot.lane.b32.xlu0 %v1023, 8
        %v1044 = vpop.permute.xlu0 %1043
        %1045 = vrot.lane.b32.xlu0 %v1024, 8
        %v1046 = vpop.permute.xlu0 %1045
        %v1047 = vlaneseq
        %v1048 = vshrl.u32 %v1047, 7
        %v1049 = vsub.s32 0, %v1048
        %v1050 = vrot.slane %v847, %v1049
        %v1051 = vmul.f32 %v1044, %v1050
        %v1052 = vmul.f32 %v1046, %v1050
        %v1053 = vadd.f32 %v1041, %v1051
        %v1054 = vadd.f32 %v1042, %v1052
        %1055 = vrot.lane.b32.xlu0 %v1023, 120
        %v1056 = vpop.permute.xlu0 %1055
        %1057 = vrot.lane.b32.xlu0 %v1024, 120
        %v1058 = vpop.permute.xlu0 %1057
        %v1059 = vlaneseq
        %v1060 = vshrl.u32 %v1059, 7
        %v1061 = vsub.s32 2, %v1060
        %v1062 = vrot.slane %v847, %v1061
        %v1063 = vmul.f32 %v1056, %v1062
        %v1064 = vmul.f32 %v1058, %v1062
        %v1065 = vadd.f32 %v1053, %v1063
        %v1066 = vadd.f32 %v1054, %v1064
        %1067 = vrot.lane.b32.xlu0 %v1023, 112
        %v1068 = vpop.permute.xlu0 %1067
        %1069 = vrot.lane.b32.xlu0 %v1024, 112
        %v1070 = vpop.permute.xlu0 %1069
        %v1071 = vlaneseq
        %v1072 = vshrl.u32 %v1071, 7
        %v1073 = vsub.s32 3, %v1072
        %v1074 = vrot.slane %v847, %v1073
        %v1075 = vmul.f32 %v1068, %v1074
        %v1076 = vmul.f32 %v1070, %v1074
        %v1077 = vadd.f32 %v1065, %v1075
        %v1078 = vadd.f32 %v1066, %v1076
        %v1079 = vadd.f32 %v1021, %v1077
        %v1080 = vadd.f32 %v1022, %v1078
        %v1081 = vld [vmem:[#allocation2 + $0x4] sm:$0xff]
        %v1082 = vld [vmem:[#allocation2 + $0xc] sm:$0xff]
        %v1083 = vlaneseq
        %v1084 = vshrl.u32 %v1083, 7
        %v1085 = vsub.s32 6, %v1084
        %v1086 = vrot.slane %v847, %v1085
        %v1087 = vmul.f32 %v1081, %v1086
        %v1088 = vmul.f32 %v1082, %v1086
        %1089 = vrot.lane.b32.xlu0 %v1081, 16
        %v1090 = vpop.permute.xlu0 %1089
        %1091 = vrot.lane.b32.xlu0 %v1082, 16
        %v1092 = vpop.permute.xlu0 %1091
        %v1093 = vlaneseq
        %v1094 = vshrl.u32 %v1093, 7
        %v1095 = vsub.s32 4, %v1094
        %v1096 = vrot.slane %v847, %v1095
        %v1097 = vmul.f32 %v1090, %v1096
        %v1098 = vmul.f32 %v1092, %v1096
        %v1099 = vadd.f32 %v1087, %v1097
        %v1100 = vadd.f32 %v1088, %v1098
        %1101 = vrot.lane.b32.xlu0 %v1081, 8
        %v1102 = vpop.permute.xlu0 %1101
        %1103 = vrot.lane.b32.xlu0 %v1082, 8
        %v1104 = vpop.permute.xlu0 %1103
        %v1105 = vlaneseq
        %v1106 = vshrl.u32 %v1105, 7
        %v1107 = vsub.s32 5, %v1106
        %v1108 = vrot.slane %v847, %v1107
        %v1109 = vmul.f32 %v1102, %v1108
        %v1110 = vmul.f32 %v1104, %v1108
        %v1111 = vadd.f32 %v1099, %v1109
        %v1112 = vadd.f32 %v1100, %v1110
        %1113 = vrot.lane.b32.xlu0 %v1081, 120
        %v1114 = vpop.permute.xlu0 %1113
        %1115 = vrot.lane.b32.xlu0 %v1082, 120
        %v1116 = vpop.permute.xlu0 %1115
        %v1117 = vlaneseq
        %v1118 = vshrl.u32 %v1117, 7
        %v1119 = vsub.s32 7, %v1118
        %v1120 = vrot.slane %v847, %v1119
        %v1121 = vmul.f32 %v1114, %v1120
        %v1122 = vmul.f32 %v1116, %v1120
        %v1123 = vadd.f32 %v1111, %v1121
        %v1124 = vadd.f32 %v1112, %v1122
        %1125 = vrot.lane.b32.xlu0 %v1081, 112
        %v1126 = vpop.permute.xlu0 %1125
        %1127 = vrot.lane.b32.xlu0 %v1082, 112
        %v1128 = vpop.permute.xlu0 %1127
        %v1129 = vlaneseq
        %v1130 = vshrl.u32 %v1129, 7
        %v1131 = vsub.s32 0, %v1130
        %v1132 = vrot.slane %v848, %v1131
        %v1133 = vmul.f32 %v1126, %v1132
        %v1134 = vmul.f32 %v1128, %v1132
        %v1135 = vadd.f32 %v1123, %v1133
        %v1136 = vadd.f32 %v1124, %v1134
        %v1137 = vadd.f32 %v1079, %v1135
        %v1138 = vadd.f32 %v1080, %v1136
        %v1139 = vlaneseq
        %v1140 = vshrl.u32 %v1139, 7
        %v1141 = vsub.s32 7, %v1140
        %v1142 = vrot.slane %v849, %v1141
        %v1143 = vmul.f32 %v1137, %v1142
        %v1144 = vmul.f32 %v1138, %v1142
        %1145 = vrot.lane.b32.xlu0 %v1137, 121
        %v1146 = vpop.permute.xlu0 %1145
        %1147 = vrot.lane.b32.xlu0 %v1138, 121
        %v1148 = vpop.permute.xlu0 %1147
        %v1149 = vlaneseq
        %v1150 = vshrl.u32 %v1149, 7
        %v1151 = vsub.s32 0, %v1150
        %v1152 = vrot.slane %v849, %v1151
        %v1153 = vmul.f32 %v1146, %v1152
        %v1154 = vmul.f32 %v1148, %v1152
        %v1155 = vadd.f32 %v1143, %v1153
        %v1156 = vadd.f32 %v1144, %v1154
        %1157 = vrot.lane.b32.xlu0 %v1137, 122
        %v1158 = vpop.permute.xlu0 %1157
        %1159 = vrot.lane.b32.xlu0 %v1138, 122
        %v1160 = vpop.permute.xlu0 %1159
        %v1161 = vlaneseq
        %v1162 = vshrl.u32 %v1161, 7
        %v1163 = vsub.s32 1, %v1162
        %v1164 = vrot.slane %v849, %v1163
        %v1165 = vmul.f32 %v1158, %v1164
        %v1166 = vmul.f32 %v1160, %v1164
        %v1167 = vadd.f32 %v1155, %v1165
        %v1168 = vadd.f32 %v1156, %v1166
        %1169 = vrot.lane.b32.xlu0 %v1137, 123
        %v1170 = vpop.permute.xlu0 %1169
        %1171 = vrot.lane.b32.xlu0 %v1138, 123
        %v1172 = vpop.permute.xlu0 %1171
        %v1173 = vlaneseq
        %v1174 = vshrl.u32 %v1173, 7
        %v1175 = vsub.s32 2, %v1174
        %v1176 = vrot.slane %v849, %v1175
        %v1177 = vmul.f32 %v1170, %v1176
        %v1178 = vmul.f32 %v1172, %v1176
        %v1179 = vadd.f32 %v1167, %v1177
        %v1180 = vadd.f32 %v1168, %v1178
        %1181 = vrot.lane.b32.xlu0 %v1137, 124
        %v1182 = vpop.permute.xlu0 %1181
        %1183 = vrot.lane.b32.xlu0 %v1138, 124
        %v1184 = vpop.permute.xlu0 %1183
        %v1185 = vlaneseq
        %v1186 = vshrl.u32 %v1185, 7
        %v1187 = vsub.s32 3, %v1186
        %v1188 = vrot.slane %v849, %v1187
        %v1189 = vmul.f32 %v1182, %v1188
        %v1190 = vmul.f32 %v1184, %v1188
        %v1191 = vadd.f32 %v1179, %v1189
        %v1192 = vadd.f32 %v1180, %v1190
        %1193 = vrot.lane.b32.xlu0 %v1137, 125
        %v1194 = vpop.permute.xlu0 %1193
        %1195 = vrot.lane.b32.xlu0 %v1138, 125
        %v1196 = vpop.permute.xlu0 %1195
        %v1197 = vlaneseq
        %v1198 = vshrl.u32 %v1197, 7
        %v1199 = vsub.s32 4, %v1198
        %v1200 = vrot.slane %v849, %v1199
        %v1201 = vmul.f32 %v1194, %v1200
        %v1202 = vmul.f32 %v1196, %v1200
        %v1203 = vadd.f32 %v1191, %v1201
        %v1204 = vadd.f32 %v1192, %v1202
        %1205 = vrot.lane.b32.xlu0 %v1137, 126
        %v1206 = vpop.permute.xlu0 %1205
        %1207 = vrot.lane.b32.xlu0 %v1138, 126
        %v1208 = vpop.permute.xlu0 %1207
        %v1209 = vlaneseq
        %v1210 = vshrl.u32 %v1209, 7
        %v1211 = vsub.s32 5, %v1210
        %v1212 = vrot.slane %v849, %v1211
        %v1213 = vmul.f32 %v1206, %v1212
        %v1214 = vmul.f32 %v1208, %v1212
        %v1215 = vadd.f32 %v1203, %v1213
        %v1216 = vadd.f32 %v1204, %v1214
        %1217 = vrot.lane.b32.xlu0 %v1137, 127
        %v1218 = vpop.permute.xlu0 %1217
        %1219 = vrot.lane.b32.xlu0 %v1138, 127
        %v1220 = vpop.permute.xlu0 %1219
        %v1221 = vlaneseq
        %v1222 = vshrl.u32 %v1221, 7
        %v1223 = vsub.s32 6, %v1222
        %v1224 = vrot.slane %v849, %v1223
        %v1225 = vmul.f32 %v1218, %v1224
        %v1226 = vmul.f32 %v1220, %v1224
        %v1227 = vadd.f32 %v1215, %v1225
        %v1228 = vadd.f32 %v1216, %v1226
        %1229 = vrot.lane.b32.xlu0 %v1137, 1
        %v1230 = vpop.permute.xlu0 %1229
        %1231 = vrot.lane.b32.xlu0 %v1138, 1
        %v1232 = vpop.permute.xlu0 %1231
        %v1233 = vlaneseq
        %v1234 = vshrl.u32 %v1233, 7
        %v1235 = vsub.s32 0, %v1234
        %v1236 = vrot.slane %v850, %v1235
        %v1237 = vmul.f32 %v1230, %v1236
        %v1238 = vmul.f32 %v1232, %v1236
        %v1239 = vadd.f32 %v1227, %v1237
        %v1240 = vadd.f32 %v1228, %v1238
        %1241 = vrot.lane.b32.xlu0 %v1137, 2
        %v1242 = vpop.permute.xlu0 %1241
        %1243 = vrot.lane.b32.xlu0 %v1138, 2
        %v1244 = vpop.permute.xlu0 %1243
        %v1245 = vlaneseq
        %v1246 = vshrl.u32 %v1245, 7
        %v1247 = vsub.s32 1, %v1246
        %v1248 = vrot.slane %v850, %v1247
        %v1249 = vmul.f32 %v1242, %v1248
        %v1250 = vmul.f32 %v1244, %v1248
        %v1251 = vadd.f32 %v1239, %v1249
        %v1252 = vadd.f32 %v1240, %v1250
        %1253 = vrot.lane.b32.xlu0 %v1137, 3
        %v1254 = vpop.permute.xlu0 %1253
        %1255 = vrot.lane.b32.xlu0 %v1138, 3
        %v1256 = vpop.permute.xlu0 %1255
        %v1257 = vlaneseq
        %v1258 = vshrl.u32 %v1257, 7
        %v1259 = vsub.s32 2, %v1258
        %v1260 = vrot.slane %v850, %v1259
        %v1261 = vmul.f32 %v1254, %v1260
        %v1262 = vmul.f32 %v1256, %v1260
        %v1263 = vadd.f32 %v1251, %v1261
        %v1264 = vadd.f32 %v1252, %v1262
        %1265 = vrot.lane.b32.xlu0 %v1137, 4
        %v1266 = vpop.permute.xlu0 %1265
        %1267 = vrot.lane.b32.xlu0 %v1138, 4
        %v1268 = vpop.permute.xlu0 %1267
        %v1269 = vlaneseq
        %v1270 = vshrl.u32 %v1269, 7
        %v1271 = vsub.s32 3, %v1270
        %v1272 = vrot.slane %v850, %v1271
        %v1273 = vmul.f32 %v1266, %v1272
        %v1274 = vmul.f32 %v1268, %v1272
        %v1275 = vadd.f32 %v1263, %v1273
        %v1276 = vadd.f32 %v1264, %v1274
        %1277 = vrot.lane.b32.xlu0 %v1137, 5
        %v1278 = vpop.permute.xlu0 %1277
        %1279 = vrot.lane.b32.xlu0 %v1138, 5
        %v1280 = vpop.permute.xlu0 %1279
        %v1281 = vlaneseq
        %v1282 = vshrl.u32 %v1281, 7
        %v1283 = vsub.s32 4, %v1282
        %v1284 = vrot.slane %v850, %v1283
        %v1285 = vmul.f32 %v1278, %v1284
        %v1286 = vmul.f32 %v1280, %v1284
        %v1287 = vadd.f32 %v1275, %v1285
        %v1288 = vadd.f32 %v1276, %v1286
        %1289 = vrot.lane.b32.xlu0 %v1137, 6
        %v1290 = vpop.permute.xlu0 %1289
        %1291 = vrot.lane.b32.xlu0 %v1138, 6
        %v1292 = vpop.permute.xlu0 %1291
        %v1293 = vlaneseq
        %v1294 = vshrl.u32 %v1293, 7
        %v1295 = vsub.s32 5, %v1294
        %v1296 = vrot.slane %v850, %v1295
        %v1297 = vmul.f32 %v1290, %v1296
        %v1298 = vmul.f32 %v1292, %v1296
        %v1299 = vadd.f32 %v1287, %v1297
        %v1300 = vadd.f32 %v1288, %v1298
        %1301 = vrot.lane.b32.xlu0 %v1137, 7
        %v1302 = vpop.permute.xlu0 %1301
        %1303 = vrot.lane.b32.xlu0 %v1138, 7
        %v1304 = vpop.permute.xlu0 %1303
        %v1305 = vlaneseq
        %v1306 = vshrl.u32 %v1305, 7
        %v1307 = vsub.s32 6, %v1306
        %v1308 = vrot.slane %v850, %v1307
        %v1309 = vmul.f32 %v1302, %v1308
        %v1310 = vmul.f32 %v1304, %v1308
        %v1311 = vadd.f32 %v1299, %v1309
        %v1312 = vadd.f32 %v1300, %v1310
        %v1313 = vld [vmem:[%s6] sm:$0x1]
        %v1315 = vlaneseq
        %v1316 = vshrl.u32 %v1315, 7
        %v1317 = vsub.s32 0, %v1316
        %v1318 = vrot.slane %v1313, %v1317
        %v1320 = vadd.f32 %v1311, %v1318
        %v1321 = vadd.f32 %v1312, %v1318
        %v1322 = vadd.f32 %v1320, %v841
        %v1323 = vadd.f32 %v1321, %v842
        %v1324 = vmax.f32 %v1322, 0.0
        %v1325 = vmax.f32 %v1323, 0.0
        %1326 = vst [vmem:[%s354] sm:$0xff] %v1324
        %1327 = vst [vmem:[%s354 + $0x8] sm:$0xff] %v1325
        %s1328 = sand.u32 %s186, 1
        %s1329 = scalar_lea.sflag [#allocation5], %s1328
        %s1330 = sand.u32 %s186, 1
        %s1331 = smul.addr %s1330, 16
        %s1332 = scalar_lea.vmem [#allocation12], %s1331
        // Predicated region
        $region69: #{tpu_custom_call.1} parent=47 // pred_check
          %p1333 = pneg %p196
        $region70: #{tpu_custom_call.1} parent=47 // pred_check_branch
          %1335 = sbr.rel (%p1333) target = $region72
        $region71: #{tpu_custom_call.1} parent=47 // pred_region
          %s1337 = ssub.s32 256, 256
          %1338 = vsyncadd %s1329, %s1337
          %s1339 = smul.addr %s26, 2
          %s1340 = smul.addr %s1339, 128
          %s1341 = scalar_lea.hbm %s7, %s1340
          %s1342 = sshll.u32 %s1332, 4
          %s1343 = int_to_ptr.vmem [resolvable:$true] %s1342
          %1348 = dma.vmem_to_hbm [thread:$0]  %s1343, 256, %s1341, %s1329, 128, 128, 8
        $region72: #{tpu_custom_call.1} parent=47 // pred_fallthru
          _
      $region48: #{tpu_custom_call.1} parent=5 // pred_fallthru
        _
      %p1349 = scmp.le.s32.totalorder 2, %s21
      // Predicated region
      $region73: #{tpu_custom_call.1} parent=5 // pred_check
        %p1350 = pneg %p1349
      $region74: #{tpu_custom_call.1} parent=5 // pred_check_branch
        %1352 = sbr.rel (%p1350) target = $region76
      $region75: #{tpu_custom_call.1} parent=5 // pred_region
        %s1353 = ssub.s32 %s21, 2
        // Predicated region
        $region77: #{tpu_custom_call.1} parent=75 // pred_check
          %p1354 = pneg %p202
        $region78: #{tpu_custom_call.1} parent=75 // pred_check_branch
          %1356 = sbr.rel (%p1354) target = $region80
        $region79: #{tpu_custom_call.1} parent=75 // pred_region
          %s1357 = sand.u32 %s187, 1
          %s1358 = scalar_lea.sflag [#allocation5], %s1357
          %s1359 = sand.u32 %s187, 1
          %s1360 = smul.addr %s1359, 16
          %s1361 = scalar_lea.vmem [#allocation12], %s1360
          %1362 = dma.done %s1358, 256
        $region80: #{tpu_custom_call.1} parent=75 // pred_fallthru
          _
      $region76: #{tpu_custom_call.1} parent=5 // pred_fallthru
        _
    $region6: #{tpu_custom_call.1} parent=1 // loop_footer
      %s25 = sadd.s32 1, %s21
    $region7: #{tpu_custom_call.1} parent=1 // loop_footer_branch
      %20 = sbr.rel target = $region3
    $region8: #{tpu_custom_call.1} parent=1 // loop_exit
      _
    %1363 = vsyncpa [#allocation4], 1
    %s1364 = scalar_lea.sflag [#allocation4], 1
    %1365 = vsyncpa %s1364, 1
    %1366 = vsyncpa [#allocation7], 1
    %1367 = vsyncpa [#allocation10], 1
    %1368 = vsyncpa [#allocation5], 1
    %s1369 = scalar_lea.sflag [#allocation5], 1
    %1370 = vsyncpa %s1369, 1

</llo_original>
